<compile_context>
chip_gen: v7x
topology: tpu7x:2x2x1
jax: 0.10.0
libtpu: 0.0.40
codegen_flags: <defaults>
</compile_context>

<pallas_src>
import functools
import math

import jax
import jax.numpy as jnp
from jax.experimental import pallas as pl
from jax.experimental.pallas import tpu as pltpu

HIDDEN = 128
LANE = 128
MAX_TK = 2048            # layer-0 K tile when the weight matrix must be streamed
MAX_RESIDENT_D = 6144    # below this, keep the whole layer-0 weight VMEM-resident


def _round_up(x, m):
    return ((x + m - 1) // m) * m


def _layer0_k_tiling(d):
    """Layer-0 reduction tiling for the (B, D) @ (D, 3H) matmul.

    Returns (tk, nk, d_pad).  For small D we skip K-tiling entirely so the
    layer-0 weights are DMA'd once and stay VMEM-resident across batch tiles.
    """
    d_lane = _round_up(d, LANE)
    if d_lane <= MAX_RESIDENT_D:
        return d_lane, 1, d_lane
    nk = pl.cdiv(d_lane, MAX_TK)
    tk = _round_up(pl.cdiv(d_lane, nk), LANE)
    return tk, nk, tk * nk


def _batch_tiling(B, nk):
    """Returns (tb, b_pad, nb)."""
    if B <= 8:
        return B, B, 1
    if nk == 1:
        # Layer-0 weights are resident, so extra batch tiles are ~free: use >=2
        # tiles when possible so v7x's second TensorCore gets work.
        nb = 2 if B >= 16 else 1
        tb = _round_up(pl.cdiv(B, nb), 8)
        while tb > 512:
            nb *= 2
            tb = _round_up(pl.cdiv(B, nb), 8)
        return tb, tb * nb, nb
    # K-tiled layer 0: every batch tile re-streams the big weight matrix, so
    # make batch tiles as large as VMEM comfortably allows (up to 512 rows).
    nb = pl.cdiv(B, 512)
    tb = _round_up(pl.cdiv(B, nb), 8)
    return tb, tb * nb, nb


def _lstm_cell(gates, hidden):
    # PyTorch gate order is (i, f, g, o); forget gate pruned -> (i, g, o).
    i_g = jax.nn.sigmoid(gates[:, 0 * hidden:1 * hidden])
    g_g = jnp.tanh(gates[:, 1 * hidden:2 * hidden])
    o_g = jax.nn.sigmoid(gates[:, 2 * hidden:3 * hidden])
    return o_g * jnp.tanh(i_g * g_g)          # c = i * g   (c_prev == 0)


def _lstm_fc_tail(gates0, layer_refs, num_layers, hidden):
    """Hidden LSTM layers + FC head: bf16 MXU matmuls, f32 accumulation."""
    h = _lstm_cell(gates0, hidden)
    for layer in range(1, num_layers):
        w_ref = layer_refs[2 * (layer - 1)]
        b_ref = layer_refs[2 * (layer - 1) + 1]
        gates = jnp.dot(h.astype(jnp.bfloat16), w_ref[...],
                        preferred_element_type=jnp.float32) + b_ref[...]
        h = _lstm_cell(gates, hidden)
    w_fc_ref, b_fc_ref = layer_refs[-2], layer_refs[-1]
    return jnp.dot(h.astype(jnp.bfloat16), w_fc_ref[...],
                   preferred_element_type=jnp.float32) + b_fc_ref[...]


def _resident_kernel(num_layers, hidden, x_ref, w0_ref, b0_ref, *rest):
    """nk == 1: layer-0 weights fully VMEM-resident, no accumulator phases."""
    out_ref = rest[-1]
    gates0 = jnp.dot(x_ref[...], w0_ref[...],
                     preferred_element_type=jnp.float32) + b0_ref[...]
    out_ref[...] = _lstm_fc_tail(gates0, rest[:-1], num_layers, hidden)


def _ktiled_kernel(num_layers, hidden, x_ref, w0_ref, b0_ref, *rest):
    """nk > 1: layer-0 matmul K-tiled with an f32 VMEM accumulator."""
    out_ref, acc_ref = rest[-2], rest[-1]
    k = pl.program_id(1)

    @pl.when(k == 0)
    def _():
        acc_ref[...] = jnp.zeros_like(acc_ref)

    # Partial layer-0 pre-activation: bf16 x bf16 on the MXU, f32 accumulate.
    acc_ref[...] += jnp.dot(x_ref[...], w0_ref[...],
                            preferred_element_type=jnp.float32)

    @pl.when(k == pl.num_programs(1) - 1)
    def _():
        out_ref[...] = _lstm_fc_tail(acc_ref[...] + b0_ref[...],
                                     rest[:-2], num_layers, hidden)


def rnn_forward(x_nchw, params, *, num_layers, num_classes, hidden=HIDDEN):
    """x_nchw: (B, 3, H, W) float32.  Returns (B, num_classes) float32."""
    B = x_nchw.shape[0]
    D = math.prod(x_nchw.shape[1:])
    G = 3 * hidden
    nc_pad = params["b_fc"].shape[-1]            # num_classes padded to 128

    tk, nk, d_pad = _layer0_k_tiling(D)
    tb, b_pad, nb = _batch_tiling(B, nk)

    # Stream x in bf16 (halves activation HBM traffic; matmul is native bf16).
    x_flat = x_nchw.reshape(B, D).astype(jnp.bfloat16)
    if b_pad > B or d_pad > D:
        x_flat = jnp.pad(x_flat, ((0, b_pad - B), (0, d_pad - D)))

    const2d = lambda *_: (0, 0)                  # grid-invariant operands

    kernel_inputs = [x_flat, params["w_0_T"], params["b_0"]]
    if nk == 1:
        in_specs = [
            pl.BlockSpec((tb, d_pad), lambda b: (b, 0)),      # x (bf16)
            pl.BlockSpec((d_pad, G), const2d),                # w0: fetched once
            pl.BlockSpec((1, G), const2d),                    # fused bias 0
        ]
        out_index = lambda b: (b, 0)
        grid = (nb,)
        dim_sem = ("parallel",)
        scratch = []
        kernel = functools.partial(_resident_kernel, num_layers, hidden)
    else:
        in_specs = [
            pl.BlockSpec((tb, tk), lambda b, k: (b, k)),      # x (K-tiled, bf16)
            pl.BlockSpec((tk, G), lambda b, k: (k, 0)),       # w0 tile (bf16)
            pl.BlockSpec((1, G), const2d),                    # fused bias 0
        ]
        out_index = lambda b, k: (b, 0)
        grid = (nb, nk)
        dim_sem = ("parallel", "arbitrary")
        scratch = [pltpu.VMEM((tb, G), jnp.float32)]
        kernel = functools.partial(_ktiled_kernel, num_layers, hidden)

    for layer in range(1, num_layers):
        kernel_inputs.append(params[f"w_{layer}_T"])          # (hidden, 3H) bf16
        kernel_inputs.append(params[f"b_{layer}"])            # (1, 3H) f32
        in_specs.append(pl.BlockSpec((hidden, G), const2d))
        in_specs.append(pl.BlockSpec((1, G), const2d))
    kernel_inputs.append(params["w_fc_T"])                    # (hidden, nc_pad) bf16
    kernel_inputs.append(params["b_fc"])                      # (1, nc_pad) f32
    in_specs.append(pl.BlockSpec((hidden, nc_pad), const2d))
    in_specs.append(pl.BlockSpec((1, nc_pad), const2d))

    out_specs = pl.BlockSpec((tb, nc_pad), out_index)

    # Advisory cost estimate; bytes reflect per-batch-tile w0 re-streaming.
    flops = (2 * b_pad * d_pad * G
             + (num_layers - 1) * 2 * b_pad * hidden * G
             + 2 * b_pad * hidden * nc_pad)
    transcendentals = b_pad * num_layers * 4 * hidden
    w0_stream = d_pad * G * 2 * (nb if nk > 1 else 1)
    bytes_accessed = (b_pad * d_pad * 2 + w0_stream + G * 4
                      + (num_layers - 1) * (hidden * G * 2 + G * 4)
                      + hidden * nc_pad * 2 + nc_pad * 4
                      + b_pad * nc_pad * 4)

    # VMEM budget: double-buffered tiles + resident weights + scratch.
    tb8 = _round_up(tb, 8)
    vmem_est = (2 * tb8 * tk * 2                              # x tiles (bf16)
                + 2 * tk * G * 2                              # layer-0 w tiles
                + 2 * 8 * G * 4                               # layer-0 bias
                + (num_layers - 1) * 2 * (hidden * G * 2 + 8 * G * 4)
                + 2 * (hidden * nc_pad * 2 + 8 * nc_pad * 4)  # fc
                + 2 * tb8 * nc_pad * 4                        # out tiles
                + (tb8 * G * 4 if nk > 1 else 0))             # f32 accumulator
    try:
        phys_vmem = int(pltpu.get_tpu_info().vmem_capacity_bytes)
    except Exception:
        phys_vmem = 64 << 20
    vmem_cap = (3 * phys_vmem) // 4          # ~48 MiB v7x, ~96 MiB v5e/v6e
    vmem_limit = int(min(vmem_cap, max(16 << 20, 2 * vmem_est)))

    out_pad = pl.pallas_call(
        kernel,
        out_shape=jax.ShapeDtypeStruct((b_pad, nc_pad), jnp.float32),
        grid_spec=pltpu.PrefetchScalarGridSpec(
            num_scalar_prefetch=0,
            grid=grid,
            in_specs=in_specs,
            out_specs=out_specs,
            scratch_shapes=scratch,
        ),
        compiler_params=pltpu.CompilerParams(
            dimension_semantics=dim_sem,
            vmem_limit_bytes=vmem_limit,
        ),
        cost_estimate=pl.CostEstimate(
            flops=int(flops),
            transcendentals=int(transcendentals),
            bytes_accessed=int(bytes_accessed),
        ),
    )(*kernel_inputs)

    return out_pad[:B, :num_classes]


def init_params(key, *, image_size, num_layers, num_classes, hidden=HIDDEN):
    """PyTorch-style uniform init; forget gate pruned (exact for h0=c0=0,
    seq_len=1), weights stored bf16 and pre-transposed for the kernel."""
    input_size = image_size * image_size * 3
    _, _, d_pad = _layer0_k_tiling(input_size)
    nc_pad = _round_up(num_classes, LANE)

    params = {}
    bound = 1.0 / math.sqrt(hidden)
    d_in = input_size
    for layer in range(num_layers):
        key, k1, k2, k3 = jax.random.split(key, 4)
        w_ih = jax.random.uniform(k1, (4 * hidden, d_in), jnp.float32, -bound, bound)
        b_ih = jax.random.uniform(k2, (4 * hidden,), jnp.float32, -bound, bound)
        b_hh = jax.random.uniform(k3, (4 * hidden,), jnp.float32, -bound, bound)
        # Prune the forget gate (c_prev == 0 -> exact): keep (i, g, o).
        w_keep = jnp.concatenate([w_ih[:hidden], w_ih[2 * hidden:]], axis=0)   # (3H, d_in)
        b_fused = b_ih + b_hh
        b_keep = jnp.concatenate([b_fused[:hidden], b_fused[2 * hidden:]], axis=0)
        w_t = w_keep.T                                                          # (d_in, 3H)
        if layer == 0 and d_pad > d_in:
            w_t = jnp.pad(w_t, ((0, d_pad - d_in), (0, 0)))                    # zero rows: exact
        params[f"w_{layer}_T"] = w_t.astype(jnp.bfloat16)
        params[f"b_{layer}"] = b_keep.reshape(1, -1).astype(jnp.float32)
        d_in = hidden

    key, k1, k2 = jax.random.split(key, 3)
    w_fc = jax.random.uniform(k1, (num_classes, hidden), jnp.float32, -bound, bound)
    b_fc = jax.random.uniform(k2, (num_classes,), jnp.float32, -bound, bound)
    params["w_fc_T"] = jnp.pad(
        w_fc.T, ((0, 0), (0, nc_pad - num_classes))).astype(jnp.bfloat16)
    params["b_fc"] = jnp.pad(
        b_fc, (0, nc_pad - num_classes)).reshape(1, -1).astype(jnp.float32)
    return params


def rnn_reference(x_nchw, params, *, num_layers, num_classes, hidden=HIDDEN):
    """Pure-JAX reference on the same pruned / bf16 parameters, with the same
    bf16-activation matmul precision as the kernel."""
    B = x_nchw.shape[0]
    h = x_nchw.reshape(B, -1).astype(jnp.bfloat16)
    d = h.shape[1]
    for layer in range(num_layers):
        w = params[f"w_{layer}_T"]
        if layer == 0:
            w = w[:d]
        gates = jnp.dot(h, w, preferred_element_type=jnp.float32) + params[f"b_{layer}"]
        i_g = jax.nn.sigmoid(gates[:, :hidden])
        g_g = jnp.tanh(gates[:, hidden:2 * hidden])
        o_g = jax.nn.sigmoid(gates[:, 2 * hidden:])
        h = (o_g * jnp.tanh(i_g * g_g)).astype(jnp.bfloat16)
    out = jnp.dot(h, params["w_fc_T"], preferred_element_type=jnp.float32) + params["b_fc"]
    return out[:, :num_classes]


if __name__ == "__main__":
    image_size = 16
    num_layers = 2
    num_classes = 10
    batch = 2

    key = jax.random.PRNGKey(0)
    key, kx = jax.random.split(key)
    x = jax.random.normal(kx, (batch, 3, image_size, image_size), jnp.float32)

    params = init_params(key, image_size=image_size, num_layers=num_layers,
                         num_classes=num_classes)

    out = rnn_forward(x, params, num_layers=num_layers, num_classes=num_classes)
    out = jax.block_until_ready(out)
    assert out.shape == (batch, num_classes)

    ref = rnn_reference(x, params, num_layers=num_layers, num_classes=num_classes)
    assert jnp.allclose(out, ref, atol=1e-2, rtol=1e-2), "mismatch vs reference"

    print("KERNEL_OK")
</pallas_src>

<mosaic_0001>
module attributes {stable_mosaic.version = 11 : i64} {
  func.func @_resident_kernel(%arg0: i32, %arg1: memref<2x768xbf16, #tpu.memory_space<vmem>>, %arg2: memref<768x384xbf16, #tpu.memory_space<vmem>>, %arg3: memref<1x384xf32, #tpu.memory_space<vmem>>, %arg4: memref<128x384xbf16, #tpu.memory_space<vmem>>, %arg5: memref<1x384xf32, #tpu.memory_space<vmem>>, %arg6: memref<128x128xbf16, #tpu.memory_space<vmem>>, %arg7: memref<1x128xf32, #tpu.memory_space<vmem>>, %arg8: memref<2x128xf32, #tpu.memory_space<vmem>>) attributes {dimension_semantics = [#tpu.dimension_semantics<parallel>], iteration_bounds = array<i64: 1>, scalar_prefetch = 0 : i64, scratch_operands = 0 : i64, tpu.core_type = #tpu.core_type<tc>, window_params = [{transform_indices = @transform_0, window_bounds = array<i64: 2, 768>}, {pipeline_mode = #tpu.pipeline_mode<synchronous>, transform_indices = @transform_1, window_bounds = array<i64: 768, 384>}, {pipeline_mode = #tpu.pipeline_mode<synchronous>, transform_indices = @transform_2, window_bounds = array<i64: 1, 384>}, {pipeline_mode = #tpu.pipeline_mode<synchronous>, transform_indices = @transform_3, window_bounds = array<i64: 128, 384>}, {pipeline_mode = #tpu.pipeline_mode<synchronous>, transform_indices = @transform_4, window_bounds = array<i64: 1, 384>}, {pipeline_mode = #tpu.pipeline_mode<synchronous>, transform_indices = @transform_5, window_bounds = array<i64: 128, 128>}, {pipeline_mode = #tpu.pipeline_mode<synchronous>, transform_indices = @transform_6, window_bounds = array<i64: 1, 128>}, {transform_indices = @transform_7, window_bounds = array<i64: 2, 128>}]} {
    %c0 = arith.constant 0 : index
    %c0_0 = arith.constant 0 : index
    %0 = vector.load %arg1[%c0, %c0_0] : memref<2x768xbf16, #tpu.memory_space<vmem>>, vector<2x768xbf16>
    %c0_1 = arith.constant 0 : index
    %c0_2 = arith.constant 0 : index
    %1 = vector.load %arg2[%c0_1, %c0_2] : memref<768x384xbf16, #tpu.memory_space<vmem>>, vector<768x384xbf16>
    %cst = arith.constant dense<0.000000e+00> : vector<2x384xf32>
    %2 = tpu.matmul %0, %1, %cst {dimension_numbers = #tpu.dot_dimension_numbers<[1], [0], [0], [1], [0, 0, 1, 1], [], []>} : vector<2x768xbf16>, vector<768x384xbf16>, vector<2x384xf32> -> vector<2x384xf32>
    %c0_3 = arith.constant 0 : index
    %c0_4 = arith.constant 0 : index
    %3 = vector.load %arg3[%c0_3, %c0_4] : memref<1x384xf32, #tpu.memory_space<vmem>>, vector<1x384xf32>
    %4 = vector.broadcast %3 : vector<1x384xf32> to vector<2x384xf32>
    %5 = arith.addf %2, %4 : vector<2x384xf32>
    %6 = vector.extract_strided_slice %5 {offsets = [0, 0], sizes = [2, 128], strides = [1, 1]} : vector<2x384xf32> to vector<2x128xf32>
    %7 = arith.negf %6 : vector<2x128xf32>
    %8 = math.exp %7 : vector<2x128xf32>
    %cst_5 = arith.constant 1.000000e+00 : f32
    %9 = vector.broadcast %cst_5 : f32 to vector<2x128xf32>
    %10 = arith.addf %9, %8 : vector<2x128xf32>
    %11 = arith.divf %9, %10 : vector<2x128xf32>
    %12 = vector.extract_strided_slice %5 {offsets = [0, 128], sizes = [2, 128], strides = [1, 1]} : vector<2x384xf32> to vector<2x128xf32>
    %13 = math.tanh %12 : vector<2x128xf32>
    %14 = vector.extract_strided_slice %5 {offsets = [0, 256], sizes = [2, 128], strides = [1, 1]} : vector<2x384xf32> to vector<2x128xf32>
    %15 = arith.negf %14 : vector<2x128xf32>
    %16 = math.exp %15 : vector<2x128xf32>
    %cst_6 = arith.constant 1.000000e+00 : f32
    %17 = vector.broadcast %cst_6 : f32 to vector<2x128xf32>
    %18 = arith.addf %17, %16 : vector<2x128xf32>
    %19 = arith.divf %17, %18 : vector<2x128xf32>
    %20 = arith.mulf %11, %13 : vector<2x128xf32>
    %21 = math.tanh %20 : vector<2x128xf32>
    %22 = arith.mulf %19, %21 : vector<2x128xf32>
    %23 = arith.truncf %22 : vector<2x128xf32> to vector<2x128xbf16>
    %c0_7 = arith.constant 0 : index
    %c0_8 = arith.constant 0 : index
    %24 = vector.load %arg4[%c0_7, %c0_8] : memref<128x384xbf16, #tpu.memory_space<vmem>>, vector<128x384xbf16>
    %cst_9 = arith.constant dense<0.000000e+00> : vector<2x384xf32>
    %25 = tpu.matmul %23, %24, %cst_9 {dimension_numbers = #tpu.dot_dimension_numbers<[1], [0], [0], [1], [0, 0, 1, 1], [], []>} : vector<2x128xbf16>, vector<128x384xbf16>, vector<2x384xf32> -> vector<2x384xf32>
    %c0_10 = arith.constant 0 : index
    %c0_11 = arith.constant 0 : index
    %26 = vector.load %arg5[%c0_10, %c0_11] : memref<1x384xf32, #tpu.memory_space<vmem>>, vector<1x384xf32>
    %27 = vector.broadcast %26 : vector<1x384xf32> to vector<2x384xf32>
    %28 = arith.addf %25, %27 : vector<2x384xf32>
    %29 = vector.extract_strided_slice %28 {offsets = [0, 0], sizes = [2, 128], strides = [1, 1]} : vector<2x384xf32> to vector<2x128xf32>
    %30 = arith.negf %29 : vector<2x128xf32>
    %31 = math.exp %30 : vector<2x128xf32>
    %cst_12 = arith.constant 1.000000e+00 : f32
    %32 = vector.broadcast %cst_12 : f32 to vector<2x128xf32>
    %33 = arith.addf %32, %31 : vector<2x128xf32>
    %34 = arith.divf %32, %33 : vector<2x128xf32>
    %35 = vector.extract_strided_slice %28 {offsets = [0, 128], sizes = [2, 128], strides = [1, 1]} : vector<2x384xf32> to vector<2x128xf32>
    %36 = math.tanh %35 : vector<2x128xf32>
    %37 = vector.extract_strided_slice %28 {offsets = [0, 256], sizes = [2, 128], strides = [1, 1]} : vector<2x384xf32> to vector<2x128xf32>
    %38 = arith.negf %37 : vector<2x128xf32>
    %39 = math.exp %38 : vector<2x128xf32>
    %cst_13 = arith.constant 1.000000e+00 : f32
    %40 = vector.broadcast %cst_13 : f32 to vector<2x128xf32>
    %41 = arith.addf %40, %39 : vector<2x128xf32>
    %42 = arith.divf %40, %41 : vector<2x128xf32>
    %43 = arith.mulf %34, %36 : vector<2x128xf32>
    %44 = math.tanh %43 : vector<2x128xf32>
    %45 = arith.mulf %42, %44 : vector<2x128xf32>
    %46 = arith.truncf %45 : vector<2x128xf32> to vector<2x128xbf16>
    %c0_14 = arith.constant 0 : index
    %c0_15 = arith.constant 0 : index
    %47 = vector.load %arg6[%c0_14, %c0_15] : memref<128x128xbf16, #tpu.memory_space<vmem>>, vector<128x128xbf16>
    %cst_16 = arith.constant dense<0.000000e+00> : vector<2x128xf32>
    %48 = tpu.matmul %46, %47, %cst_16 {dimension_numbers = #tpu.dot_dimension_numbers<[1], [0], [0], [1], [0, 0, 1, 1], [], []>} : vector<2x128xbf16>, vector<128x128xbf16>, vector<2x128xf32> -> vector<2x128xf32>
    %c0_17 = arith.constant 0 : index
    %c0_18 = arith.constant 0 : index
    %49 = vector.load %arg7[%c0_17, %c0_18] : memref<1x128xf32, #tpu.memory_space<vmem>>, vector<1x128xf32>
    %50 = vector.broadcast %49 : vector<1x128xf32> to vector<2x128xf32>
    %51 = arith.addf %48, %50 : vector<2x128xf32>
    %c0_19 = arith.constant 0 : index
    %c0_20 = arith.constant 0 : index
    %52 = vector.load %arg8[%c0_19, %c0_20] : memref<2x128xf32, #tpu.memory_space<vmem>>, vector<2x128xf32>
    tpu.vector_store %arg8[%c0_19, %c0_20], %51 {strides = array<i32>} : memref<2x128xf32, #tpu.memory_space<vmem>>, vector<2x128xf32>,
    return
  }
  func.func @transform_0(%arg0: i32) -> (i32, i32) {
    %c0_i32 = arith.constant 0 : i32
    %c0_i32_0 = arith.constant 0 : i32
    return %arg0, %c0_i32 : i32, i32
  }
  func.func @transform_1(%arg0: i32) -> (i32, i32) {
    %c0_i32 = arith.constant 0 : i32
    %c0_i32_0 = arith.constant 0 : i32
    %c0_i32_1 = arith.constant 0 : i32
    return %c0_i32, %c0_i32_0 : i32, i32
  }
  func.func @transform_2(%arg0: i32) -> (i32, i32) {
    %c0_i32 = arith.constant 0 : i32
    %c0_i32_0 = arith.constant 0 : i32
    %c0_i32_1 = arith.constant 0 : i32
    return %c0_i32, %c0_i32_0 : i32, i32
  }
  func.func @transform_3(%arg0: i32) -> (i32, i32) {
    %c0_i32 = arith.constant 0 : i32
    %c0_i32_0 = arith.constant 0 : i32
    %c0_i32_1 = arith.constant 0 : i32
    return %c0_i32, %c0_i32_0 : i32, i32
  }
  func.func @transform_4(%arg0: i32) -> (i32, i32) {
    %c0_i32 = arith.constant 0 : i32
    %c0_i32_0 = arith.constant 0 : i32
    %c0_i32_1 = arith.constant 0 : i32
    return %c0_i32, %c0_i32_0 : i32, i32
  }
  func.func @transform_5(%arg0: i32) -> (i32, i32) {
    %c0_i32 = arith.constant 0 : i32
    %c0_i32_0 = arith.constant 0 : i32
    %c0_i32_1 = arith.constant 0 : i32
    return %c0_i32, %c0_i32_0 : i32, i32
  }
  func.func @transform_6(%arg0: i32) -> (i32, i32) {
    %c0_i32 = arith.constant 0 : i32
    %c0_i32_0 = arith.constant 0 : i32
    %c0_i32_1 = arith.constant 0 : i32
    return %c0_i32, %c0_i32_0 : i32, i32
  }
  func.func @transform_7(%arg0: i32) -> (i32, i32) {
    %c0_i32 = arith.constant 0 : i32
    %c0_i32_0 = arith.constant 0 : i32
    return %arg0, %c0_i32 : i32, i32
  }
}

</mosaic_0001>

<llo_original>
// kernel: tpu_custom_call.1
$region0: #{tpu_custom_call.1}
  #allocation0 [shape = 'u32[]', space=smem, size = 0x4, offset = 0x4, fixed_abs, tag = 'smem constant byte address 0x4 - core index']
  #allocation1 [shape = 'u32[144,128]{1,0:T(1,128)}', space=vmem, size = 0x12000, scoped, tag = 'internal scratch']
  %s0 = inlined_call_operand.hbm [shape: bf16[2,768], index: 0, kind: input, shape index: {}]
  %s1 = inlined_call_operand.hbm [shape: bf16[768,384], index: 1, kind: input, shape index: {}]
  %s2 = inlined_call_operand.vmem [shape: f32[1,384], index: 2, kind: input, shape index: {}]
  %s3 = inlined_call_operand.hbm [shape: bf16[128,384], index: 3, kind: input, shape index: {}]
  %s4 = inlined_call_operand.vmem [shape: f32[1,384], index: 4, kind: input, shape index: {}]
  %s5 = inlined_call_operand.hbm [shape: bf16[128,128], index: 5, kind: input, shape index: {}]
  %s6 = inlined_call_operand.vmem [shape: f32[1,128], index: 6, kind: input, shape index: {}]
  %s7 = inlined_call_operand.hbm [shape: f32[2,128], index: 7, kind: output, shape index: {}]
  %s8 = sld [smem:[#allocation0]]
  $region54: #{tpu_custom_call.1} parent=0
    _
  %s10 = ssub.s32 1, %s8
  %s11 = scalar_select 0, %s10, %s8
  $region1: #{tpu_custom_call.1} parent=0
    #allocation2 [shape = 'u8[3072]{0}', space=vmem, size = 0xc00, scoped, tag = 'input window, operand 0, single buffered']
    #allocation3 [shape = 's32[1]{0}', space=sflag, size = 0x4, scoped, tag = 'scoped memory for tpu_custom_call.1']
    #allocation4 [shape = 's32[1]{0}', space=sflag, size = 0x4, scoped, tag = 'scoped memory for tpu_custom_call.1']
    #allocation5 [shape = 'u8[589824]{0}', space=vmem, size = 0x90000, scoped, tag = 'input window, operand 1, single buffered']
    #allocation6 [shape = 's32[1]{0}', space=sflag, size = 0x4, scoped, tag = 'scoped memory for tpu_custom_call.1']
    #allocation7 [shape = 'u8[98304]{0}', space=vmem, size = 0x18000, scoped, tag = 'input window, operand 3, single buffered']
    #allocation8 [shape = 'u8[32768]{0}', space=vmem, size = 0x8000, scoped, tag = 'input window, operand 5, single buffered']
    #allocation9 [shape = 's32[1]{0}', space=sflag, size = 0x4, scoped, tag = 'scoped memory for tpu_custom_call.1']
    #allocation10 [shape = 'u8[1024]{0}', space=vmem, size = 0x400, scoped, tag = 'output window, operand 0, single buffered']
    %12 = vsyncpa [#allocation3], 0
    %13 = vsyncpa [#allocation6], 0
    %14 = vsyncpa [#allocation9], 0
    %15 = vsyncpa [#allocation4], 0
    // Predicated region
    $region2: #{tpu_custom_call.1} parent=1 // pred_check
      _
    $region3: #{tpu_custom_call.1} parent=1 // pred_check_branch
      %17 = sbr.rel (0) target = $region5
    $region4: #{tpu_custom_call.1} parent=1 // pred_region
      %s19 = ssub.s32 96, 96
      %20 = vsyncadd [#allocation3], %s19
      %s22 = sshll.u32 [#allocation2], 4
      %s23 = int_to_ptr.vmem [resolvable:$true] %s22
      %25 = dma.hbm_to_vmem [thread:$0]  %s0, 96, %s23, [#allocation3]
    $region5: #{tpu_custom_call.1} parent=1 // pred_fallthru
      _
    // Predicated region
    $region6: #{tpu_custom_call.1} parent=1 // pred_check
      _
    $region7: #{tpu_custom_call.1} parent=1 // pred_check_branch
      %27 = sbr.rel (0) target = $region9
    $region8: #{tpu_custom_call.1} parent=1 // pred_region
      %s29 = ssub.s32 18432, 18432
      %30 = vsyncadd [#allocation6], %s29
      %s31 = sshll.u32 [#allocation5], 4
      %s32 = int_to_ptr.vmem [resolvable:$true] %s31
      %37 = dma.hbm_to_vmem [thread:$0]  %s1, 18432, %s32, [#allocation6], 192, 192, 12
    $region9: #{tpu_custom_call.1} parent=1 // pred_fallthru
      _
    // Predicated region
    $region10: #{tpu_custom_call.1} parent=1 // pred_check
      _
    $region11: #{tpu_custom_call.1} parent=1 // pred_check_branch
      %39 = sbr.rel (0) target = $region13
    $region12: #{tpu_custom_call.1} parent=1 // pred_region
      _
    $region13: #{tpu_custom_call.1} parent=1 // pred_fallthru
      _
    // Predicated region
    $region14: #{tpu_custom_call.1} parent=1 // pred_check
      _
    $region15: #{tpu_custom_call.1} parent=1 // pred_check_branch
      %41 = sbr.rel (0) target = $region17
    $region16: #{tpu_custom_call.1} parent=1 // pred_region
      %s43 = ssub.s32 3072, 3072
      %44 = vsyncadd [#allocation6], %s43
      %s45 = sshll.u32 [#allocation7], 4
      %s46 = int_to_ptr.vmem [resolvable:$true] %s45
      %51 = dma.hbm_to_vmem [thread:$0]  %s3, 3072, %s46, [#allocation6], 192, 192, 12
    $region17: #{tpu_custom_call.1} parent=1 // pred_fallthru
      _
    // Predicated region
    $region18: #{tpu_custom_call.1} parent=1 // pred_check
      _
    $region19: #{tpu_custom_call.1} parent=1 // pred_check_branch
      %53 = sbr.rel (0) target = $region21
    $region20: #{tpu_custom_call.1} parent=1 // pred_region
      _
    $region21: #{tpu_custom_call.1} parent=1 // pred_fallthru
      _
    // Predicated region
    $region22: #{tpu_custom_call.1} parent=1 // pred_check
      _
    $region23: #{tpu_custom_call.1} parent=1 // pred_check_branch
      %55 = sbr.rel (0) target = $region25
    $region24: #{tpu_custom_call.1} parent=1 // pred_region
      %s57 = ssub.s32 1024, 1024
      %58 = vsyncadd [#allocation9], %s57
      %s59 = sshll.u32 [#allocation8], 4
      %s60 = int_to_ptr.vmem [resolvable:$true] %s59
      %65 = dma.hbm_to_vmem [thread:$0]  %s5, 1024, %s60, [#allocation9], 64, 64, 4
    $region25: #{tpu_custom_call.1} parent=1 // pred_fallthru
      _
    // Predicated region
    $region26: #{tpu_custom_call.1} parent=1 // pred_check
      _
    $region27: #{tpu_custom_call.1} parent=1 // pred_check_branch
      %67 = sbr.rel (0) target = $region29
    $region28: #{tpu_custom_call.1} parent=1 // pred_region
      _
    $region29: #{tpu_custom_call.1} parent=1 // pred_fallthru
      _
    // Predicated region
    $region30: #{tpu_custom_call.1} parent=1 // pred_check
      _
    $region31: #{tpu_custom_call.1} parent=1 // pred_check_branch
      %69 = sbr.rel (0) target = $region33
    $region32: #{tpu_custom_call.1} parent=1 // pred_region
      %70 = dma.done [#allocation3], 96
    $region33: #{tpu_custom_call.1} parent=1 // pred_fallthru
      _
    // Predicated region
    $region34: #{tpu_custom_call.1} parent=1 // pred_check
      _
    $region35: #{tpu_custom_call.1} parent=1 // pred_check_branch
      %72 = sbr.rel (0) target = $region37
    $region36: #{tpu_custom_call.1} parent=1 // pred_region
      %73 = dma.done [#allocation6], 18432
    $region37: #{tpu_custom_call.1} parent=1 // pred_fallthru
      _
    // Predicated region
    $region38: #{tpu_custom_call.1} parent=1 // pred_check
      _
    $region39: #{tpu_custom_call.1} parent=1 // pred_check_branch
      %75 = sbr.rel (0) target = $region41
    $region40: #{tpu_custom_call.1} parent=1 // pred_region
      %76 = dma.done [#allocation6], 3072
    $region41: #{tpu_custom_call.1} parent=1 // pred_fallthru
      _
    // Predicated region
    $region42: #{tpu_custom_call.1} parent=1 // pred_check
      _
    $region43: #{tpu_custom_call.1} parent=1 // pred_check_branch
      %78 = sbr.rel (0) target = $region45
    $region44: #{tpu_custom_call.1} parent=1 // pred_region
      %79 = dma.done [#allocation9], 1024
    $region45: #{tpu_custom_call.1} parent=1 // pred_fallthru
      _
    %v81 = vld [vmem:[#allocation2] sm:$0x3f]
    %v82 = vld [vmem:[#allocation5] sm:$0xff]
    %v83 = vld [vmem:[#allocation5 + $0x8] sm:$0xf]
    %v84 = vld [vmem:[#allocation5 + $0xc] sm:$0xff]
    %v85 = vld [vmem:[#allocation5 + $0x14] sm:$0xf]
    %v86 = vld [vmem:[#allocation5 + $0x18] sm:$0xff]
    %v87 = vld [vmem:[#allocation5 + $0x20] sm:$0xf]
    %v88 = vld [vmem:[#allocation5 + $0x24] sm:$0xff]
    %v89 = vld [vmem:[#allocation5 + $0x2c] sm:$0xf]
    %v90 = vld [vmem:[#allocation5 + $0x30] sm:$0xff]
    %v91 = vld [vmem:[#allocation5 + $0x38] sm:$0xf]
    %v92 = vld [vmem:[#allocation5 + $0x3c] sm:$0xff]
    %v93 = vld [vmem:[#allocation5 + $0x44] sm:$0xf]
    %v94 = vld [vmem:[#allocation5 + $0x48] sm:$0xff]
    %v95 = vld [vmem:[#allocation5 + $0x50] sm:$0xf]
    %v96 = vld [vmem:[#allocation5 + $0x54] sm:$0xff]
    %v97 = vld [vmem:[#allocation5 + $0x5c] sm:$0xf]
    %v98 = vld [vmem:[#allocation5 + $0x60] sm:$0xff]
    %v99 = vld [vmem:[#allocation5 + $0x68] sm:$0xf]
    %v100 = vld [vmem:[#allocation5 + $0x6c] sm:$0xff]
    %v101 = vld [vmem:[#allocation5 + $0x74] sm:$0xf]
    %v102 = vld [vmem:[#allocation5 + $0x78] sm:$0xff]
    %v103 = vld [vmem:[#allocation5 + $0x80] sm:$0xf]
    %v104 = vld [vmem:[#allocation5 + $0x84] sm:$0xff]
    %v105 = vld [vmem:[#allocation5 + $0x8c] sm:$0xf]
    %v106 = vld [vmem:[#allocation5 + $0x90] sm:$0xff]
    %v107 = vld [vmem:[#allocation5 + $0x98] sm:$0xf]
    %v108 = vld [vmem:[#allocation5 + $0x9c] sm:$0xff]
    %v109 = vld [vmem:[#allocation5 + $0xa4] sm:$0xf]
    %v110 = vld [vmem:[#allocation5 + $0xa8] sm:$0xff]
    %v111 = vld [vmem:[#allocation5 + $0xb0] sm:$0xf]
    %v112 = vld [vmem:[#allocation5 + $0xb4] sm:$0xff]
    %v113 = vld [vmem:[#allocation5 + $0xbc] sm:$0xf]
    %v114 = vld [vmem:[#allocation5 + $0xc0] sm:$0xff]
    %v115 = vld [vmem:[#allocation5 + $0xc8] sm:$0xf]
    %v116 = vld [vmem:[#allocation5 + $0xcc] sm:$0xff]
    %v117 = vld [vmem:[#allocation5 + $0xd4] sm:$0xf]
    %v118 = vld [vmem:[#allocation5 + $0xd8] sm:$0xff]
    %v119 = vld [vmem:[#allocation5 + $0xe0] sm:$0xf]
    %v120 = vld [vmem:[#allocation5 + $0xe4] sm:$0xff]
    %v121 = vld [vmem:[#allocation5 + $0xec] sm:$0xf]
    %v122 = vld [vmem:[#allocation5 + $0xf0] sm:$0xff]
    %v123 = vld [vmem:[#allocation5 + $0xf8] sm:$0xf]
    %v124 = vld [vmem:[#allocation5 + $0xfc] sm:$0xff]
    %v125 = vld [vmem:[#allocation5 + $0x104] sm:$0xf]
    %v126 = vld [vmem:[#allocation5 + $0x108] sm:$0xff]
    %v127 = vld [vmem:[#allocation5 + $0x110] sm:$0xf]
    %v128 = vld [vmem:[#allocation5 + $0x114] sm:$0xff]
    %v129 = vld [vmem:[#allocation5 + $0x11c] sm:$0xf]
    %v130 = vld [vmem:[#allocation5 + $0x120] sm:$0xff]
    %v131 = vld [vmem:[#allocation5 + $0x128] sm:$0xf]
    %v132 = vld [vmem:[#allocation5 + $0x12c] sm:$0xff]
    %v133 = vld [vmem:[#allocation5 + $0x134] sm:$0xf]
    %v134 = vld [vmem:[#allocation5 + $0x138] sm:$0xff]
    %v135 = vld [vmem:[#allocation5 + $0x140] sm:$0xf]
    %v136 = vld [vmem:[#allocation5 + $0x144] sm:$0xff]
    %v137 = vld [vmem:[#allocation5 + $0x14c] sm:$0xf]
    %v138 = vld [vmem:[#allocation5 + $0x150] sm:$0xff]
    %v139 = vld [vmem:[#allocation5 + $0x158] sm:$0xf]
    %v140 = vld [vmem:[#allocation5 + $0x15c] sm:$0xff]
    %v141 = vld [vmem:[#allocation5 + $0x164] sm:$0xf]
    %v142 = vld [vmem:[#allocation5 + $0x168] sm:$0xff]
    %v143 = vld [vmem:[#allocation5 + $0x170] sm:$0xf]
    %v144 = vld [vmem:[#allocation5 + $0x174] sm:$0xff]
    %v145 = vld [vmem:[#allocation5 + $0x17c] sm:$0xf]
    %v146 = vld [vmem:[#allocation5 + $0x180] sm:$0xff]
    %v147 = vld [vmem:[#allocation5 + $0x188] sm:$0xf]
    %v148 = vld [vmem:[#allocation5 + $0x18c] sm:$0xff]
    %v149 = vld [vmem:[#allocation5 + $0x194] sm:$0xf]
    %v150 = vld [vmem:[#allocation5 + $0x198] sm:$0xff]
    %v151 = vld [vmem:[#allocation5 + $0x1a0] sm:$0xf]
    %v152 = vld [vmem:[#allocation5 + $0x1a4] sm:$0xff]
    %v153 = vld [vmem:[#allocation5 + $0x1ac] sm:$0xf]
    %v154 = vld [vmem:[#allocation5 + $0x1b0] sm:$0xff]
    %v155 = vld [vmem:[#allocation5 + $0x1b8] sm:$0xf]
    %v156 = vld [vmem:[#allocation5 + $0x1bc] sm:$0xff]
    %v157 = vld [vmem:[#allocation5 + $0x1c4] sm:$0xf]
    %v158 = vld [vmem:[#allocation5 + $0x1c8] sm:$0xff]
    %v159 = vld [vmem:[#allocation5 + $0x1d0] sm:$0xf]
    %v160 = vld [vmem:[#allocation5 + $0x1d4] sm:$0xff]
    %v161 = vld [vmem:[#allocation5 + $0x1dc] sm:$0xf]
    %v162 = vld [vmem:[#allocation5 + $0x1e0] sm:$0xff]
    %v163 = vld [vmem:[#allocation5 + $0x1e8] sm:$0xf]
    %v164 = vld [vmem:[#allocation5 + $0x1ec] sm:$0xff]
    %v165 = vld [vmem:[#allocation5 + $0x1f4] sm:$0xf]
    %v166 = vld [vmem:[#allocation5 + $0x1f8] sm:$0xff]
    %v167 = vld [vmem:[#allocation5 + $0x200] sm:$0xf]
    %v168 = vld [vmem:[#allocation5 + $0x204] sm:$0xff]
    %v169 = vld [vmem:[#allocation5 + $0x20c] sm:$0xf]
    %v170 = vld [vmem:[#allocation5 + $0x210] sm:$0xff]
    %v171 = vld [vmem:[#allocation5 + $0x218] sm:$0xf]
    %v172 = vld [vmem:[#allocation5 + $0x21c] sm:$0xff]
    %v173 = vld [vmem:[#allocation5 + $0x224] sm:$0xf]
    %v174 = vld [vmem:[#allocation5 + $0x228] sm:$0xff]
    %v175 = vld [vmem:[#allocation5 + $0x230] sm:$0xf]
    %v176 = vld [vmem:[#allocation5 + $0x234] sm:$0xff]
    %v177 = vld [vmem:[#allocation5 + $0x23c] sm:$0xf]
    %v178 = vld [vmem:[#allocation5 + $0x240] sm:$0xff]
    %v179 = vld [vmem:[#allocation5 + $0x248] sm:$0xf]
    %v180 = vld [vmem:[#allocation5 + $0x24c] sm:$0xff]
    %v181 = vld [vmem:[#allocation5 + $0x254] sm:$0xf]
    %v182 = vld [vmem:[#allocation5 + $0x258] sm:$0xff]
    %v183 = vld [vmem:[#allocation5 + $0x260] sm:$0xf]
    %v184 = vld [vmem:[#allocation5 + $0x264] sm:$0xff]
    %v185 = vld [vmem:[#allocation5 + $0x26c] sm:$0xf]
    %v186 = vld [vmem:[#allocation5 + $0x270] sm:$0xff]
    %v187 = vld [vmem:[#allocation5 + $0x278] sm:$0xf]
    %v188 = vld [vmem:[#allocation5 + $0x27c] sm:$0xff]
    %v189 = vld [vmem:[#allocation5 + $0x284] sm:$0xf]
    %v190 = vld [vmem:[#allocation5 + $0x288] sm:$0xff]
    %v191 = vld [vmem:[#allocation5 + $0x290] sm:$0xf]
    %v192 = vld [vmem:[#allocation5 + $0x294] sm:$0xff]
    %v193 = vld [vmem:[#allocation5 + $0x29c] sm:$0xf]
    %v194 = vld [vmem:[#allocation5 + $0x2a0] sm:$0xff]
    %v195 = vld [vmem:[#allocation5 + $0x2a8] sm:$0xf]
    %v196 = vld [vmem:[#allocation5 + $0x2ac] sm:$0xff]
    %v197 = vld [vmem:[#allocation5 + $0x2b4] sm:$0xf]
    %v198 = vld [vmem:[#allocation5 + $0x2b8] sm:$0xff]
    %v199 = vld [vmem:[#allocation5 + $0x2c0] sm:$0xf]
    %v200 = vld [vmem:[#allocation5 + $0x2c4] sm:$0xff]
    %v201 = vld [vmem:[#allocation5 + $0x2cc] sm:$0xf]
    %v202 = vld [vmem:[#allocation5 + $0x2d0] sm:$0xff]
    %v203 = vld [vmem:[#allocation5 + $0x2d8] sm:$0xf]
    %v204 = vld [vmem:[#allocation5 + $0x2dc] sm:$0xff]
    %v205 = vld [vmem:[#allocation5 + $0x2e4] sm:$0xf]
    %v206 = vld [vmem:[#allocation5 + $0x2e8] sm:$0xff]
    %v207 = vld [vmem:[#allocation5 + $0x2f0] sm:$0xf]
    %v208 = vld [vmem:[#allocation5 + $0x2f4] sm:$0xff]
    %v209 = vld [vmem:[#allocation5 + $0x2fc] sm:$0xf]
    %v210 = vld [vmem:[#allocation5 + $0x300] sm:$0xff]
    %v211 = vld [vmem:[#allocation5 + $0x308] sm:$0xf]
    %v212 = vld [vmem:[#allocation5 + $0x30c] sm:$0xff]
    %v213 = vld [vmem:[#allocation5 + $0x314] sm:$0xf]
    %v214 = vld [vmem:[#allocation5 + $0x318] sm:$0xff]
    %v215 = vld [vmem:[#allocation5 + $0x320] sm:$0xf]
    %v216 = vld [vmem:[#allocation5 + $0x324] sm:$0xff]
    %v217 = vld [vmem:[#allocation5 + $0x32c] sm:$0xf]
    %v218 = vld [vmem:[#allocation5 + $0x330] sm:$0xff]
    %v219 = vld [vmem:[#allocation5 + $0x338] sm:$0xf]
    %v220 = vld [vmem:[#allocation5 + $0x33c] sm:$0xff]
    %v221 = vld [vmem:[#allocation5 + $0x344] sm:$0xf]
    %v222 = vld [vmem:[#allocation5 + $0x348] sm:$0xff]
    %v223 = vld [vmem:[#allocation5 + $0x350] sm:$0xf]
    %v224 = vld [vmem:[#allocation5 + $0x354] sm:$0xff]
    %v225 = vld [vmem:[#allocation5 + $0x35c] sm:$0xf]
    %v226 = vld [vmem:[#allocation5 + $0x360] sm:$0xff]
    %v227 = vld [vmem:[#allocation5 + $0x368] sm:$0xf]
    %v228 = vld [vmem:[#allocation5 + $0x36c] sm:$0xff]
    %v229 = vld [vmem:[#allocation5 + $0x374] sm:$0xf]
    %v230 = vld [vmem:[#allocation5 + $0x378] sm:$0xff]
    %v231 = vld [vmem:[#allocation5 + $0x380] sm:$0xf]
    %v232 = vld [vmem:[#allocation5 + $0x384] sm:$0xff]
    %v233 = vld [vmem:[#allocation5 + $0x38c] sm:$0xf]
    %v234 = vld [vmem:[#allocation5 + $0x390] sm:$0xff]
    %v235 = vld [vmem:[#allocation5 + $0x398] sm:$0xf]
    %v236 = vld [vmem:[#allocation5 + $0x39c] sm:$0xff]
    %v237 = vld [vmem:[#allocation5 + $0x3a4] sm:$0xf]
    %v238 = vld [vmem:[#allocation5 + $0x3a8] sm:$0xff]
    %v239 = vld [vmem:[#allocation5 + $0x3b0] sm:$0xf]
    %v240 = vld [vmem:[#allocation5 + $0x3b4] sm:$0xff]
    %v241 = vld [vmem:[#allocation5 + $0x3bc] sm:$0xf]
    %v242 = vld [vmem:[#allocation5 + $0x3c0] sm:$0xff]
    %v243 = vld [vmem:[#allocation5 + $0x3c8] sm:$0xf]
    %v244 = vld [vmem:[#allocation5 + $0x3cc] sm:$0xff]
    %v245 = vld [vmem:[#allocation5 + $0x3d4] sm:$0xf]
    %v246 = vld [vmem:[#allocation5 + $0x3d8] sm:$0xff]
    %v247 = vld [vmem:[#allocation5 + $0x3e0] sm:$0xf]
    %v248 = vld [vmem:[#allocation5 + $0x3e4] sm:$0xff]
    %v249 = vld [vmem:[#allocation5 + $0x3ec] sm:$0xf]
    %v250 = vld [vmem:[#allocation5 + $0x3f0] sm:$0xff]
    %v251 = vld [vmem:[#allocation5 + $0x3f8] sm:$0xf]
    %v252 = vld [vmem:[#allocation5 + $0x3fc] sm:$0xff]
    %v253 = vld [vmem:[#allocation5 + $0x404] sm:$0xf]
    %v254 = vld [vmem:[#allocation5 + $0x408] sm:$0xff]
    %v255 = vld [vmem:[#allocation5 + $0x410] sm:$0xf]
    %v256 = vld [vmem:[#allocation5 + $0x414] sm:$0xff]
    %v257 = vld [vmem:[#allocation5 + $0x41c] sm:$0xf]
    %v258 = vld [vmem:[#allocation5 + $0x420] sm:$0xff]
    %v259 = vld [vmem:[#allocation5 + $0x428] sm:$0xf]
    %v260 = vld [vmem:[#allocation5 + $0x42c] sm:$0xff]
    %v261 = vld [vmem:[#allocation5 + $0x434] sm:$0xf]
    %v262 = vld [vmem:[#allocation5 + $0x438] sm:$0xff]
    %v263 = vld [vmem:[#allocation5 + $0x440] sm:$0xf]
    %v264 = vld [vmem:[#allocation5 + $0x444] sm:$0xff]
    %v265 = vld [vmem:[#allocation5 + $0x44c] sm:$0xf]
    %v266 = vld [vmem:[#allocation5 + $0x450] sm:$0xff]
    %v267 = vld [vmem:[#allocation5 + $0x458] sm:$0xf]
    %v268 = vld [vmem:[#allocation5 + $0x45c] sm:$0xff]
    %v269 = vld [vmem:[#allocation5 + $0x464] sm:$0xf]
    %v270 = vld [vmem:[#allocation5 + $0x468] sm:$0xff]
    %v271 = vld [vmem:[#allocation5 + $0x470] sm:$0xf]
    %v272 = vld [vmem:[#allocation5 + $0x474] sm:$0xff]
    %v273 = vld [vmem:[#allocation5 + $0x47c] sm:$0xf]
    %v274 = vld [vmem:[%s2] sm:$0x7]
    %v276 = vlaneseq
    %v277 = vshrl.u32 %v276, 7
    %v278 = vsub.s32 0, %v277
    %v279 = vrot.slane %v274, %v278
    %v280 = vlaneseq
    %v281 = vshrl.u32 %v280, 7
    %v282 = vsub.s32 1, %v281
    %v283 = vrot.slane %v274, %v282
    %v284 = vlaneseq
    %v285 = vshrl.u32 %v284, 7
    %v286 = vsub.s32 2, %v285
    %v287 = vrot.slane %v274, %v286
    %v292 = vcombine.high %v81, %v81
    %v294 = vunpack.c.l.s4 1966171168
    %v295 = vunpack.c.0.s8 %v294
    %v296 = vlaneseq
    %v297 = vshrl.u32 %v296, 7
    %v298 = vsub.s32 %v295, %v297
    %v299 = vrot.slane %v81, %v298
    %v301 = vunpack.c.l.s4 1966171168
    %v302 = vunpack.c.0.s8 %v301
    %v303 = vlaneseq
    %v304 = vshrl.u32 %v303, 7
    %v305 = vsub.s32 %v302, %v304
    %v306 = vrot.slane %v292, %v305
    %v307 = vcombine.high %v299, %v299
    %v308 = vcombine.high %v306, %v306
    %v310 = vunpack.c.l.s4 1966171168
    %v311 = vunpack.c.0.s8 %v310
    %v312 = vlaneseq
    %v313 = vshrl.u32 %v312, 7
    %v314 = vsub.s32 %v311, %v313
    %v315 = vrot.slane %v299, %v314
    %v317 = vunpack.c.l.s4 1966171168
    %v318 = vunpack.c.0.s8 %v317
    %v319 = vlaneseq
    %v320 = vshrl.u32 %v319, 7
    %v321 = vsub.s32 %v318, %v320
    %v322 = vrot.slane %v306, %v321
    %v324 = vunpack.c.l.s4 1966171168
    %v325 = vunpack.c.0.s8 %v324
    %v326 = vlaneseq
    %v327 = vshrl.u32 %v326, 7
    %v328 = vsub.s32 %v325, %v327
    %v329 = vrot.slane %v307, %v328
    %v331 = vunpack.c.l.s4 1966171168
    %v332 = vunpack.c.0.s8 %v331
    %v333 = vlaneseq
    %v334 = vshrl.u32 %v333, 7
    %v335 = vsub.s32 %v332, %v334
    %v336 = vrot.slane %v308, %v335
    %v337 = vcombine.high %v315, %v315
    %v338 = vcombine.high %v329, %v329
    %v537 = vunpack.c.l.b16 %v82
    %v538 = vunpack.c.h.b16 %v82
    %v539 = vunpack.c.l.b16 %v83
    %v540 = vunpack.c.l.b16 %v84
    %v541 = vunpack.c.h.b16 %v84
    %v542 = vunpack.c.l.b16 %v85
    %v543 = vunpack.c.l.b16 %v86
    %v544 = vunpack.c.h.b16 %v86
    %v545 = vunpack.c.l.b16 %v87
    %v546 = vunpack.c.l.b16 %v88
    %v547 = vunpack.c.h.b16 %v88
    %v548 = vunpack.c.l.b16 %v89
    %v549 = vunpack.c.l.b16 %v90
    %v550 = vunpack.c.h.b16 %v90
    %v551 = vunpack.c.l.b16 %v91
    %v552 = vunpack.c.l.b16 %v92
    %v553 = vunpack.c.h.b16 %v92
    %v554 = vunpack.c.l.b16 %v93
    %v555 = vunpack.c.l.b16 %v94
    %v556 = vunpack.c.h.b16 %v94
    %v557 = vunpack.c.l.b16 %v95
    %v558 = vunpack.c.l.b16 %v96
    %v559 = vunpack.c.h.b16 %v96
    %v560 = vunpack.c.l.b16 %v97
    %v561 = vunpack.c.l.b16 %v98
    %v562 = vunpack.c.h.b16 %v98
    %v563 = vunpack.c.l.b16 %v99
    %v564 = vunpack.c.l.b16 %v100
    %v565 = vunpack.c.h.b16 %v100
    %v566 = vunpack.c.l.b16 %v101
    %v567 = vunpack.c.l.b16 %v102
    %v568 = vunpack.c.h.b16 %v102
    %v569 = vunpack.c.l.b16 %v103
    %v570 = vunpack.c.l.b16 %v104
    %v571 = vunpack.c.h.b16 %v104
    %v572 = vunpack.c.l.b16 %v105
    %v573 = vunpack.c.l.b16 %v106
    %v574 = vunpack.c.h.b16 %v106
    %v575 = vunpack.c.l.b16 %v107
    %v576 = vunpack.c.l.b16 %v108
    %v577 = vunpack.c.h.b16 %v108
    %v578 = vunpack.c.l.b16 %v109
    %v579 = vunpack.c.l.b16 %v110
    %v580 = vunpack.c.h.b16 %v110
    %v581 = vunpack.c.l.b16 %v111
    %v582 = vunpack.c.l.b16 %v112
    %v583 = vunpack.c.h.b16 %v112
    %v584 = vunpack.c.l.b16 %v113
    %v585 = vunpack.c.l.b16 %v114
    %v586 = vunpack.c.h.b16 %v114
    %v587 = vunpack.c.l.b16 %v115
    %v588 = vunpack.c.l.b16 %v116
    %v589 = vunpack.c.h.b16 %v116
    %v590 = vunpack.c.l.b16 %v117
    %v591 = vunpack.c.l.b16 %v118
    %v592 = vunpack.c.h.b16 %v118
    %v593 = vunpack.c.l.b16 %v119
    %v594 = vunpack.c.l.b16 %v120
    %v595 = vunpack.c.h.b16 %v120
    %v596 = vunpack.c.l.b16 %v121
    %v597 = vunpack.c.l.b16 %v122
    %v598 = vunpack.c.h.b16 %v122
    %v599 = vunpack.c.l.b16 %v123
    %v600 = vunpack.c.l.b16 %v124
    %v601 = vunpack.c.h.b16 %v124
    %v602 = vunpack.c.l.b16 %v125
    %v603 = vunpack.c.l.b16 %v126
    %v604 = vunpack.c.h.b16 %v126
    %v605 = vunpack.c.l.b16 %v127
    %v606 = vunpack.c.l.b16 %v128
    %v607 = vunpack.c.h.b16 %v128
    %v608 = vunpack.c.l.b16 %v129
    %v609 = vunpack.c.l.b16 %v130
    %v610 = vunpack.c.h.b16 %v130
    %v611 = vunpack.c.l.b16 %v131
    %v612 = vunpack.c.l.b16 %v132
    %v613 = vunpack.c.h.b16 %v132
    %v614 = vunpack.c.l.b16 %v133
    %v615 = vunpack.c.l.b16 %v134
    %v616 = vunpack.c.h.b16 %v134
    %v617 = vunpack.c.l.b16 %v135
    %v618 = vunpack.c.l.b16 %v136
    %v619 = vunpack.c.h.b16 %v136
    %v620 = vunpack.c.l.b16 %v137
    %v621 = vunpack.c.l.b16 %v138
    %v622 = vunpack.c.h.b16 %v138
    %v623 = vunpack.c.l.b16 %v139
    %v624 = vunpack.c.l.b16 %v140
    %v625 = vunpack.c.h.b16 %v140
    %v626 = vunpack.c.l.b16 %v141
    %v627 = vunpack.c.l.b16 %v142
    %v628 = vunpack.c.h.b16 %v142
    %v629 = vunpack.c.l.b16 %v143
    %v630 = vunpack.c.l.b16 %v144
    %v631 = vunpack.c.h.b16 %v144
    %v632 = vunpack.c.l.b16 %v145
    %v633 = vunpack.c.l.b16 %v146
    %v634 = vunpack.c.h.b16 %v146
    %v635 = vunpack.c.l.b16 %v147
    %v636 = vunpack.c.l.b16 %v148
    %v637 = vunpack.c.h.b16 %v148
    %v638 = vunpack.c.l.b16 %v149
    %v639 = vunpack.c.l.b16 %v150
    %v640 = vunpack.c.h.b16 %v150
    %v641 = vunpack.c.l.b16 %v151
    %v642 = vunpack.c.l.b16 %v152
    %v643 = vunpack.c.h.b16 %v152
    %v644 = vunpack.c.l.b16 %v153
    %v645 = vunpack.c.l.b16 %v154
    %v646 = vunpack.c.h.b16 %v154
    %v647 = vunpack.c.l.b16 %v155
    %v648 = vunpack.c.l.b16 %v156
    %v649 = vunpack.c.h.b16 %v156
    %v650 = vunpack.c.l.b16 %v157
    %v651 = vunpack.c.l.b16 %v158
    %v652 = vunpack.c.h.b16 %v158
    %v653 = vunpack.c.l.b16 %v159
    %v654 = vunpack.c.l.b16 %v160
    %v655 = vunpack.c.h.b16 %v160
    %v656 = vunpack.c.l.b16 %v161
    %v657 = vunpack.c.l.b16 %v162
    %v658 = vunpack.c.h.b16 %v162
    %v659 = vunpack.c.l.b16 %v163
    %v660 = vunpack.c.l.b16 %v164
    %v661 = vunpack.c.h.b16 %v164
    %v662 = vunpack.c.l.b16 %v165
    %v663 = vunpack.c.l.b16 %v166
    %v664 = vunpack.c.h.b16 %v166
    %v665 = vunpack.c.l.b16 %v167
    %v666 = vunpack.c.l.b16 %v168
    %v667 = vunpack.c.h.b16 %v168
    %v668 = vunpack.c.l.b16 %v169
    %v669 = vunpack.c.l.b16 %v170
    %v670 = vunpack.c.h.b16 %v170
    %v671 = vunpack.c.l.b16 %v171
    %v672 = vunpack.c.l.b16 %v172
    %v673 = vunpack.c.h.b16 %v172
    %v674 = vunpack.c.l.b16 %v173
    %v675 = vunpack.c.l.b16 %v174
    %v676 = vunpack.c.h.b16 %v174
    %v677 = vunpack.c.l.b16 %v175
    %v678 = vunpack.c.l.b16 %v176
    %v679 = vunpack.c.h.b16 %v176
    %v680 = vunpack.c.l.b16 %v177
    %v681 = vunpack.c.l.b16 %v178
    %v682 = vunpack.c.h.b16 %v178
    %v683 = vunpack.c.l.b16 %v179
    %v684 = vunpack.c.l.b16 %v180
    %v685 = vunpack.c.h.b16 %v180
    %v686 = vunpack.c.l.b16 %v181
    %v687 = vunpack.c.l.b16 %v182
    %v688 = vunpack.c.h.b16 %v182
    %v689 = vunpack.c.l.b16 %v183
    %v690 = vunpack.c.l.b16 %v184
    %v691 = vunpack.c.h.b16 %v184
    %v692 = vunpack.c.l.b16 %v185
    %v693 = vunpack.c.l.b16 %v186
    %v694 = vunpack.c.h.b16 %v186
    %v695 = vunpack.c.l.b16 %v187
    %v696 = vunpack.c.l.b16 %v188
    %v697 = vunpack.c.h.b16 %v188
    %v698 = vunpack.c.l.b16 %v189
    %v699 = vunpack.c.l.b16 %v190
    %v700 = vunpack.c.h.b16 %v190
    %v701 = vunpack.c.l.b16 %v191
    %v702 = vunpack.c.l.b16 %v192
    %v703 = vunpack.c.h.b16 %v192
    %v704 = vunpack.c.l.b16 %v193
    %v705 = vunpack.c.l.b16 %v194
    %v706 = vunpack.c.h.b16 %v194
    %v707 = vunpack.c.l.b16 %v195
    %v708 = vunpack.c.l.b16 %v196
    %v709 = vunpack.c.h.b16 %v196
    %v710 = vunpack.c.l.b16 %v197
    %v711 = vunpack.c.l.b16 %v198
    %v712 = vunpack.c.h.b16 %v198
    %v713 = vunpack.c.l.b16 %v199
    %v714 = vunpack.c.l.b16 %v200
    %v715 = vunpack.c.h.b16 %v200
    %v716 = vunpack.c.l.b16 %v201
    %v717 = vunpack.c.l.b16 %v202
    %v718 = vunpack.c.h.b16 %v202
    %v719 = vunpack.c.l.b16 %v203
    %v720 = vunpack.c.l.b16 %v204
    %v721 = vunpack.c.h.b16 %v204
    %v722 = vunpack.c.l.b16 %v205
    %v723 = vunpack.c.l.b16 %v206
    %v724 = vunpack.c.h.b16 %v206
    %v725 = vunpack.c.l.b16 %v207
    %v726 = vunpack.c.l.b16 %v208
    %v727 = vunpack.c.h.b16 %v208
    %v728 = vunpack.c.l.b16 %v209
    %v729 = vunpack.c.l.b16 %v210
    %v730 = vunpack.c.h.b16 %v210
    %v731 = vunpack.c.l.b16 %v211
    %v732 = vunpack.c.l.b16 %v212
    %v733 = vunpack.c.h.b16 %v212
    %v734 = vunpack.c.l.b16 %v213
    %v735 = vunpack.c.l.b16 %v214
    %v736 = vunpack.c.h.b16 %v214
    %v737 = vunpack.c.l.b16 %v215
    %v738 = vunpack.c.l.b16 %v216
    %v739 = vunpack.c.h.b16 %v216
    %v740 = vunpack.c.l.b16 %v217
    %v741 = vunpack.c.l.b16 %v218
    %v742 = vunpack.c.h.b16 %v218
    %v743 = vunpack.c.l.b16 %v219
    %v744 = vunpack.c.l.b16 %v220
    %v745 = vunpack.c.h.b16 %v220
    %v746 = vunpack.c.l.b16 %v221
    %v747 = vunpack.c.l.b16 %v222
    %v748 = vunpack.c.h.b16 %v222
    %v749 = vunpack.c.l.b16 %v223
    %v750 = vunpack.c.l.b16 %v224
    %v751 = vunpack.c.h.b16 %v224
    %v752 = vunpack.c.l.b16 %v225
    %v753 = vunpack.c.l.b16 %v226
    %v754 = vunpack.c.h.b16 %v226
    %v755 = vunpack.c.l.b16 %v227
    %v756 = vunpack.c.l.b16 %v228
    %v757 = vunpack.c.h.b16 %v228
    %v758 = vunpack.c.l.b16 %v229
    %v759 = vunpack.c.l.b16 %v230
    %v760 = vunpack.c.h.b16 %v230
    %v761 = vunpack.c.l.b16 %v231
    %v762 = vunpack.c.l.b16 %v232
    %v763 = vunpack.c.h.b16 %v232
    %v764 = vunpack.c.l.b16 %v233
    %v765 = vunpack.c.l.b16 %v234
    %v766 = vunpack.c.h.b16 %v234
    %v767 = vunpack.c.l.b16 %v235
    %v768 = vunpack.c.l.b16 %v236
    %v769 = vunpack.c.h.b16 %v236
    %v770 = vunpack.c.l.b16 %v237
    %v771 = vunpack.c.l.b16 %v238
    %v772 = vunpack.c.h.b16 %v238
    %v773 = vunpack.c.l.b16 %v239
    %v774 = vunpack.c.l.b16 %v240
    %v775 = vunpack.c.h.b16 %v240
    %v776 = vunpack.c.l.b16 %v241
    %v777 = vunpack.c.l.b16 %v242
    %v778 = vunpack.c.h.b16 %v242
    %v779 = vunpack.c.l.b16 %v243
    %v780 = vunpack.c.l.b16 %v244
    %v781 = vunpack.c.h.b16 %v244
    %v782 = vunpack.c.l.b16 %v245
    %v783 = vunpack.c.l.b16 %v246
    %v784 = vunpack.c.h.b16 %v246
    %v785 = vunpack.c.l.b16 %v247
    %v786 = vunpack.c.l.b16 %v248
    %v787 = vunpack.c.h.b16 %v248
    %v788 = vunpack.c.l.b16 %v249
    %v789 = vunpack.c.l.b16 %v250
    %v790 = vunpack.c.h.b16 %v250
    %v791 = vunpack.c.l.b16 %v251
    %v792 = vunpack.c.l.b16 %v252
    %v793 = vunpack.c.h.b16 %v252
    %v794 = vunpack.c.l.b16 %v253
    %v795 = vunpack.c.l.b16 %v254
    %v796 = vunpack.c.h.b16 %v254
    %v797 = vunpack.c.l.b16 %v255
    %v798 = vunpack.c.l.b16 %v256
    %v799 = vunpack.c.h.b16 %v256
    %v800 = vunpack.c.l.b16 %v257
    %v801 = vunpack.c.l.b16 %v258
    %v802 = vunpack.c.h.b16 %v258
    %v803 = vunpack.c.l.b16 %v259
    %v804 = vunpack.c.l.b16 %v260
    %v805 = vunpack.c.h.b16 %v260
    %v806 = vunpack.c.l.b16 %v261
    %v807 = vunpack.c.l.b16 %v262
    %v808 = vunpack.c.h.b16 %v262
    %v809 = vunpack.c.l.b16 %v263
    %v810 = vunpack.c.l.b16 %v264
    %v811 = vunpack.c.h.b16 %v264
    %v812 = vunpack.c.l.b16 %v265
    %v813 = vunpack.c.l.b16 %v266
    %v814 = vunpack.c.h.b16 %v266
    %v815 = vunpack.c.l.b16 %v267
    %v816 = vunpack.c.l.b16 %v268
    %v817 = vunpack.c.h.b16 %v268
    %v818 = vunpack.c.l.b16 %v269
    %v819 = vunpack.c.l.b16 %v270
    %v820 = vunpack.c.h.b16 %v270
    %v821 = vunpack.c.l.b16 %v271
    %v822 = vunpack.c.l.b16 %v272
    %v823 = vunpack.c.h.b16 %v272
    %v824 = vunpack.c.l.b16 %v273
    %v825 = vpack.c.b16 %v540, %v537
    %v826 = vpack.c.b16 %v541, %v538
    %v827 = vpack.c.b16 %v542, %v539
    %v828 = vpack.c.b16 %v546, %v543
    %v829 = vpack.c.b16 %v547, %v544
    %v830 = vpack.c.b16 %v548, %v545
    %v831 = vpack.c.b16 %v552, %v549
    %v832 = vpack.c.b16 %v553, %v550
    %v833 = vpack.c.b16 %v554, %v551
    %v834 = vpack.c.b16 %v558, %v555
    %v835 = vpack.c.b16 %v559, %v556
    %v836 = vpack.c.b16 %v560, %v557
    %v837 = vpack.c.b16 %v564, %v561
    %v838 = vpack.c.b16 %v565, %v562
    %v839 = vpack.c.b16 %v566, %v563
    %v840 = vpack.c.b16 %v570, %v567
    %v841 = vpack.c.b16 %v571, %v568
    %v842 = vpack.c.b16 %v572, %v569
    %v843 = vpack.c.b16 %v576, %v573
    %v844 = vpack.c.b16 %v577, %v574
    %v845 = vpack.c.b16 %v578, %v575
    %v846 = vpack.c.b16 %v582, %v579
    %v847 = vpack.c.b16 %v583, %v580
    %v848 = vpack.c.b16 %v584, %v581
    %v849 = vpack.c.b16 %v588, %v585
    %v850 = vpack.c.b16 %v589, %v586
    %v851 = vpack.c.b16 %v590, %v587
    %v852 = vpack.c.b16 %v594, %v591
    %v853 = vpack.c.b16 %v595, %v592
    %v854 = vpack.c.b16 %v596, %v593
    %v855 = vpack.c.b16 %v600, %v597
    %v856 = vpack.c.b16 %v601, %v598
    %v857 = vpack.c.b16 %v602, %v599
    %v858 = vpack.c.b16 %v606, %v603
    %v859 = vpack.c.b16 %v607, %v604
    %v860 = vpack.c.b16 %v608, %v605
    %v861 = vpack.c.b16 %v612, %v609
    %v862 = vpack.c.b16 %v613, %v610
    %v863 = vpack.c.b16 %v614, %v611
    %v864 = vpack.c.b16 %v618, %v615
    %v865 = vpack.c.b16 %v619, %v616
    %v866 = vpack.c.b16 %v620, %v617
    %v867 = vpack.c.b16 %v624, %v621
    %v868 = vpack.c.b16 %v625, %v622
    %v869 = vpack.c.b16 %v626, %v623
    %v870 = vpack.c.b16 %v630, %v627
    %v871 = vpack.c.b16 %v631, %v628
    %v872 = vpack.c.b16 %v632, %v629
    %v873 = vpack.c.b16 %v636, %v633
    %v874 = vpack.c.b16 %v637, %v634
    %v875 = vpack.c.b16 %v638, %v635
    %v876 = vpack.c.b16 %v642, %v639
    %v877 = vpack.c.b16 %v643, %v640
    %v878 = vpack.c.b16 %v644, %v641
    %v879 = vpack.c.b16 %v648, %v645
    %v880 = vpack.c.b16 %v649, %v646
    %v881 = vpack.c.b16 %v650, %v647
    %v882 = vpack.c.b16 %v654, %v651
    %v883 = vpack.c.b16 %v655, %v652
    %v884 = vpack.c.b16 %v656, %v653
    %v885 = vpack.c.b16 %v660, %v657
    %v886 = vpack.c.b16 %v661, %v658
    %v887 = vpack.c.b16 %v662, %v659
    %v888 = vpack.c.b16 %v666, %v663
    %v889 = vpack.c.b16 %v667, %v664
    %v890 = vpack.c.b16 %v668, %v665
    %v891 = vpack.c.b16 %v672, %v669
    %v892 = vpack.c.b16 %v673, %v670
    %v893 = vpack.c.b16 %v674, %v671
    %v894 = vpack.c.b16 %v678, %v675
    %v895 = vpack.c.b16 %v679, %v676
    %v896 = vpack.c.b16 %v680, %v677
    %v897 = vpack.c.b16 %v684, %v681
    %v898 = vpack.c.b16 %v685, %v682
    %v899 = vpack.c.b16 %v686, %v683
    %v900 = vpack.c.b16 %v690, %v687
    %v901 = vpack.c.b16 %v691, %v688
    %v902 = vpack.c.b16 %v692, %v689
    %v903 = vpack.c.b16 %v696, %v693
    %v904 = vpack.c.b16 %v697, %v694
    %v905 = vpack.c.b16 %v698, %v695
    %v906 = vpack.c.b16 %v702, %v699
    %v907 = vpack.c.b16 %v703, %v700
    %v908 = vpack.c.b16 %v704, %v701
    %v909 = vpack.c.b16 %v708, %v705
    %v910 = vpack.c.b16 %v709, %v706
    %v911 = vpack.c.b16 %v710, %v707
    %v912 = vpack.c.b16 %v714, %v711
    %v913 = vpack.c.b16 %v715, %v712
    %v914 = vpack.c.b16 %v716, %v713
    %v915 = vpack.c.b16 %v720, %v717
    %v916 = vpack.c.b16 %v721, %v718
    %v917 = vpack.c.b16 %v722, %v719
    %v918 = vpack.c.b16 %v726, %v723
    %v919 = vpack.c.b16 %v727, %v724
    %v920 = vpack.c.b16 %v728, %v725
    %v921 = vpack.c.b16 %v732, %v729
    %v922 = vpack.c.b16 %v733, %v730
    %v923 = vpack.c.b16 %v734, %v731
    %v924 = vpack.c.b16 %v738, %v735
    %v925 = vpack.c.b16 %v739, %v736
    %v926 = vpack.c.b16 %v740, %v737
    %v927 = vpack.c.b16 %v744, %v741
    %v928 = vpack.c.b16 %v745, %v742
    %v929 = vpack.c.b16 %v746, %v743
    %v930 = vpack.c.b16 %v750, %v747
    %v931 = vpack.c.b16 %v751, %v748
    %v932 = vpack.c.b16 %v752, %v749
    %v933 = vpack.c.b16 %v756, %v753
    %v934 = vpack.c.b16 %v757, %v754
    %v935 = vpack.c.b16 %v758, %v755
    %v936 = vpack.c.b16 %v762, %v759
    %v937 = vpack.c.b16 %v763, %v760
    %v938 = vpack.c.b16 %v764, %v761
    %v939 = vpack.c.b16 %v768, %v765
    %v940 = vpack.c.b16 %v769, %v766
    %v941 = vpack.c.b16 %v770, %v767
    %v942 = vpack.c.b16 %v774, %v771
    %v943 = vpack.c.b16 %v775, %v772
    %v944 = vpack.c.b16 %v776, %v773
    %v945 = vpack.c.b16 %v780, %v777
    %v946 = vpack.c.b16 %v781, %v778
    %v947 = vpack.c.b16 %v782, %v779
    %v948 = vpack.c.b16 %v786, %v783
    %v949 = vpack.c.b16 %v787, %v784
    %v950 = vpack.c.b16 %v788, %v785
    %v951 = vpack.c.b16 %v792, %v789
    %v952 = vpack.c.b16 %v793, %v790
    %v953 = vpack.c.b16 %v794, %v791
    %v954 = vpack.c.b16 %v798, %v795
    %v955 = vpack.c.b16 %v799, %v796
    %v956 = vpack.c.b16 %v800, %v797
    %v957 = vpack.c.b16 %v804, %v801
    %v958 = vpack.c.b16 %v805, %v802
    %v959 = vpack.c.b16 %v806, %v803
    %v960 = vpack.c.b16 %v810, %v807
    %v961 = vpack.c.b16 %v811, %v808
    %v962 = vpack.c.b16 %v812, %v809
    %v963 = vpack.c.b16 %v816, %v813
    %v964 = vpack.c.b16 %v817, %v814
    %v965 = vpack.c.b16 %v818, %v815
    %v966 = vpack.c.b16 %v822, %v819
    %v967 = vpack.c.b16 %v823, %v820
    %v968 = vpack.c.b16 %v824, %v821
    %1113 = vmatprep.subr.bf16.mxu0 %v826
    %1114 = vmatpush1.bf16.msra.mxu0 %v825
    %1115 = vmatprep.subr.bf16.mxu0 %v829
    %1116 = vmatpush1.bf16.msra.mxu0 %v828
    %1117 = vmatprep.subr.bf16.mxu0 %v832
    %1118 = vmatpush1.bf16.msra.mxu0 %v831
    %1119 = vmatprep.subr.bf16.mxu0 %v835
    %1120 = vmatpush1.bf16.msra.mxu0 %v834
    %1121 = vmatprep.subr.bf16.mxu0 %v838
    %1122 = vmatpush1.bf16.msra.mxu0 %v837
    %1123 = vmatprep.subr.bf16.mxu0 %v841
    %1124 = vmatpush1.bf16.msra.mxu0 %v840
    %1125 = vmatprep.subr.bf16.mxu0 %v844
    %1126 = vmatpush1.bf16.msra.mxu0 %v843
    %1127 = vmatprep.subr.bf16.mxu0 %v847
    %1128 = vmatpush1.bf16.msra.mxu0 %v846
    %1129 = vmatprep.subr.bf16.mxu0 %v850
    %1130 = vmatpush1.bf16.msra.mxu0 %v849
    %1131 = vmatprep.subr.bf16.mxu0 %v853
    %1132 = vmatpush1.bf16.msra.mxu0 %v852
    %1133 = vmatprep.subr.bf16.mxu0 %v856
    %1134 = vmatpush1.bf16.msra.mxu0 %v855
    %1135 = vmatprep.subr.bf16.mxu0 %v859
    %1136 = vmatpush1.bf16.msra.mxu0 %v858
    %1137 = vmatprep.subr.bf16.mxu0 %v862
    %1138 = vmatpush1.bf16.msra.mxu0 %v861
    %1139 = vmatprep.subr.bf16.mxu0 %v865
    %1140 = vmatpush1.bf16.msra.mxu0 %v864
    %1141 = vmatprep.subr.bf16.mxu0 %v868
    %1142 = vmatpush1.bf16.msra.mxu0 %v867
    %1143 = vmatprep.subr.bf16.mxu0 %v871
    %1144 = vmatpush1.bf16.msra.mxu0 %v870
    %1145 = vmatprep.mubr.bf16.mxu0 %v329
    %1146 = vmatmul.mubr.bf16.gmra.mrb[0].mxu0 %v315
    %v1147 = vpop.f32.mrb[0].mxu0
    %v1148 = vadd.f32 %v279, %v1147
    %v1149 = vpop.f32.mrb[0].mxu0
    %v1150 = vadd.f32 %v283, %v1149
    %v1151 = vpop.f32.mrb[0].mxu0
    %v1152 = vpop.f32.mrb[0].mxu0
    %1153 = vdwg.mxu0
    %1154 = vmatprep.subr.bf16.mxu0 %v874
    %1155 = vmatpush1.bf16.msra.mxu0 %v873
    %1156 = vmatprep.subr.bf16.mxu0 %v877
    %1157 = vmatpush1.bf16.msra.mxu0 %v876
    %1158 = vmatprep.subr.bf16.mxu0 %v880
    %1159 = vmatpush1.bf16.msra.mxu0 %v879
    %1160 = vmatprep.subr.bf16.mxu0 %v883
    %1161 = vmatpush1.bf16.msra.mxu0 %v882
    %1162 = vmatprep.subr.bf16.mxu0 %v886
    %1163 = vmatpush1.bf16.msra.mxu0 %v885
    %1164 = vmatprep.subr.bf16.mxu0 %v889
    %1165 = vmatpush1.bf16.msra.mxu0 %v888
    %1166 = vmatprep.subr.bf16.mxu0 %v892
    %1167 = vmatpush1.bf16.msra.mxu0 %v891
    %1168 = vmatprep.subr.bf16.mxu0 %v895
    %1169 = vmatpush1.bf16.msra.mxu0 %v894
    %1170 = vmatprep.subr.bf16.mxu0 %v898
    %1171 = vmatpush1.bf16.msra.mxu0 %v897
    %1172 = vmatprep.subr.bf16.mxu0 %v901
    %1173 = vmatpush1.bf16.msra.mxu0 %v900
    %1174 = vmatprep.subr.bf16.mxu0 %v904
    %1175 = vmatpush1.bf16.msra.mxu0 %v903
    %1176 = vmatprep.subr.bf16.mxu0 %v907
    %1177 = vmatpush1.bf16.msra.mxu0 %v906
    %1178 = vmatprep.subr.bf16.mxu0 %v910
    %1179 = vmatpush1.bf16.msra.mxu0 %v909
    %1180 = vmatprep.subr.bf16.mxu0 %v913
    %1181 = vmatpush1.bf16.msra.mxu0 %v912
    %1182 = vmatprep.subr.bf16.mxu0 %v916
    %1183 = vmatpush1.bf16.msra.mxu0 %v915
    %1184 = vmatprep.subr.bf16.mxu0 %v919
    %1185 = vmatpush1.bf16.msra.mxu0 %v918
    %1186 = vmatprep.mubr.bf16.mxu0 %v338
    %1187 = vmatmul.mubr.bf16.gmra.mrb[0].mxu0 %v337
    %v1188 = vpop.f32.mrb[0].mxu0
    %v1189 = vadd.f32 %v1148, %v1188
    %v1190 = vpop.f32.mrb[0].mxu0
    %v1191 = vadd.f32 %v1150, %v1190
    %v1192 = vpop.f32.mrb[0].mxu0
    %v1193 = vpop.f32.mrb[0].mxu0
    %1194 = vdwg.mxu0
    %1195 = vmatprep.subr.bf16.mxu0 %v922
    %1196 = vmatpush1.bf16.msra.mxu0 %v921
    %1197 = vmatprep.subr.bf16.mxu0 %v925
    %1198 = vmatpush1.bf16.msra.mxu0 %v924
    %1199 = vmatprep.subr.bf16.mxu0 %v928
    %1200 = vmatpush1.bf16.msra.mxu0 %v927
    %1201 = vmatprep.subr.bf16.mxu0 %v931
    %1202 = vmatpush1.bf16.msra.mxu0 %v930
    %1203 = vmatprep.subr.bf16.mxu0 %v934
    %1204 = vmatpush1.bf16.msra.mxu0 %v933
    %1205 = vmatprep.subr.bf16.mxu0 %v937
    %1206 = vmatpush1.bf16.msra.mxu0 %v936
    %1207 = vmatprep.subr.bf16.mxu0 %v940
    %1208 = vmatpush1.bf16.msra.mxu0 %v939
    %1209 = vmatprep.subr.bf16.mxu0 %v943
    %1210 = vmatpush1.bf16.msra.mxu0 %v942
    %1211 = vmatprep.subr.bf16.mxu0 %v946
    %1212 = vmatpush1.bf16.msra.mxu0 %v945
    %1213 = vmatprep.subr.bf16.mxu0 %v949
    %1214 = vmatpush1.bf16.msra.mxu0 %v948
    %1215 = vmatprep.subr.bf16.mxu0 %v952
    %1216 = vmatpush1.bf16.msra.mxu0 %v951
    %1217 = vmatprep.subr.bf16.mxu0 %v955
    %1218 = vmatpush1.bf16.msra.mxu0 %v954
    %1219 = vmatprep.subr.bf16.mxu0 %v958
    %1220 = vmatpush1.bf16.msra.mxu0 %v957
    %1221 = vmatprep.subr.bf16.mxu0 %v961
    %1222 = vmatpush1.bf16.msra.mxu0 %v960
    %1223 = vmatprep.subr.bf16.mxu0 %v964
    %1224 = vmatpush1.bf16.msra.mxu0 %v963
    %1225 = vmatprep.subr.bf16.mxu0 %v967
    %1226 = vmatpush1.bf16.msra.mxu0 %v966
    %1227 = vmatprep.mubr.bf16.mxu0 %v336
    %1228 = vmatmul.mubr.bf16.gmra.mrb[0].mxu0 %v322
    %v1229 = vpop.f32.mrb[0].mxu0
    %v1230 = vadd.f32 %v1189, %v1229
    %v1231 = vpop.f32.mrb[0].mxu0
    %v1232 = vadd.f32 %v1191, %v1231
    %v1233 = vpop.f32.mrb[0].mxu0
    %v1234 = vpop.f32.mrb[0].mxu0
    %1235 = vdwg.mxu0
    %1236 = vmatprep.subr.bf16.mxu0 0
    %1237 = vmatpush1.bf16.msra.mxu0 %v827
    %1238 = vmatprep.subr.bf16.mxu0 0
    %1239 = vmatpush1.bf16.msra.mxu0 %v830
    %1240 = vmatprep.subr.bf16.mxu0 0
    %1241 = vmatpush1.bf16.msra.mxu0 %v833
    %1242 = vmatprep.subr.bf16.mxu0 0
    %1243 = vmatpush1.bf16.msra.mxu0 %v836
    %1244 = vmatprep.subr.bf16.mxu0 0
    %1245 = vmatpush1.bf16.msra.mxu0 %v839
    %1246 = vmatprep.subr.bf16.mxu0 0
    %1247 = vmatpush1.bf16.msra.mxu0 %v842
    %1248 = vmatprep.subr.bf16.mxu0 0
    %1249 = vmatpush1.bf16.msra.mxu0 %v845
    %1250 = vmatprep.subr.bf16.mxu0 0
    %1251 = vmatpush1.bf16.msra.mxu0 %v848
    %1252 = vmatprep.subr.bf16.mxu0 0
    %1253 = vmatpush1.bf16.msra.mxu0 %v851
    %1254 = vmatprep.subr.bf16.mxu0 0
    %1255 = vmatpush1.bf16.msra.mxu0 %v854
    %1256 = vmatprep.subr.bf16.mxu0 0
    %1257 = vmatpush1.bf16.msra.mxu0 %v857
    %1258 = vmatprep.subr.bf16.mxu0 0
    %1259 = vmatpush1.bf16.msra.mxu0 %v860
    %1260 = vmatprep.subr.bf16.mxu0 0
    %1261 = vmatpush1.bf16.msra.mxu0 %v863
    %1262 = vmatprep.subr.bf16.mxu0 0
    %1263 = vmatpush1.bf16.msra.mxu0 %v866
    %1264 = vmatprep.subr.bf16.mxu0 0
    %1265 = vmatpush1.bf16.msra.mxu0 %v869
    %1266 = vmatprep.subr.bf16.mxu0 0
    %1267 = vmatpush1.bf16.msra.mxu0 %v872
    %1268 = vmatprep.mubr.bf16.mxu0 %v329
    %1269 = vmatmul.mubr.bf16.gmra.mrb[0].mxu0 %v315
    %v1270 = vpop.f32.mrb[0].mxu0
    %v1271 = vadd.f32 %v287, %v1270
    %v1272 = vpop.f32.mrb[0].mxu0
    %v1273 = vpop.f32.mrb[0].mxu0
    %v1274 = vpop.f32.mrb[0].mxu0
    %1275 = vdwg.mxu0
    %1276 = vmatprep.subr.bf16.mxu0 0
    %1277 = vmatpush1.bf16.msra.mxu0 %v875
    %1278 = vmatprep.subr.bf16.mxu0 0
    %1279 = vmatpush1.bf16.msra.mxu0 %v878
    %1280 = vmatprep.subr.bf16.mxu0 0
    %1281 = vmatpush1.bf16.msra.mxu0 %v881
    %1282 = vmatprep.subr.bf16.mxu0 0
    %1283 = vmatpush1.bf16.msra.mxu0 %v884
    %1284 = vmatprep.subr.bf16.mxu0 0
    %1285 = vmatpush1.bf16.msra.mxu0 %v887
    %1286 = vmatprep.subr.bf16.mxu0 0
    %1287 = vmatpush1.bf16.msra.mxu0 %v890
    %1288 = vmatprep.subr.bf16.mxu0 0
    %1289 = vmatpush1.bf16.msra.mxu0 %v893
    %1290 = vmatprep.subr.bf16.mxu0 0
    %1291 = vmatpush1.bf16.msra.mxu0 %v896
    %1292 = vmatprep.subr.bf16.mxu0 0
    %1293 = vmatpush1.bf16.msra.mxu0 %v899
    %1294 = vmatprep.subr.bf16.mxu0 0
    %1295 = vmatpush1.bf16.msra.mxu0 %v902
    %1296 = vmatprep.subr.bf16.mxu0 0
    %1297 = vmatpush1.bf16.msra.mxu0 %v905
    %1298 = vmatprep.subr.bf16.mxu0 0
    %1299 = vmatpush1.bf16.msra.mxu0 %v908
    %1300 = vmatprep.subr.bf16.mxu0 0
    %1301 = vmatpush1.bf16.msra.mxu0 %v911
    %1302 = vmatprep.subr.bf16.mxu0 0
    %1303 = vmatpush1.bf16.msra.mxu0 %v914
    %1304 = vmatprep.subr.bf16.mxu0 0
    %1305 = vmatpush1.bf16.msra.mxu0 %v917
    %1306 = vmatprep.subr.bf16.mxu0 0
    %1307 = vmatpush1.bf16.msra.mxu0 %v920
    %1308 = vmatprep.mubr.bf16.mxu0 %v338
    %1309 = vmatmul.mubr.bf16.gmra.mrb[0].mxu0 %v337
    %v1310 = vpop.f32.mrb[0].mxu0
    %v1311 = vadd.f32 %v1271, %v1310
    %v1312 = vpop.f32.mrb[0].mxu0
    %v1313 = vpop.f32.mrb[0].mxu0
    %v1314 = vpop.f32.mrb[0].mxu0
    %1315 = vdwg.mxu0
    %1316 = vmatprep.subr.bf16.mxu0 0
    %1317 = vmatpush1.bf16.msra.mxu0 %v923
    %1318 = vmatprep.subr.bf16.mxu0 0
    %1319 = vmatpush1.bf16.msra.mxu0 %v926
    %1320 = vmatprep.subr.bf16.mxu0 0
    %1321 = vmatpush1.bf16.msra.mxu0 %v929
    %1322 = vmatprep.subr.bf16.mxu0 0
    %1323 = vmatpush1.bf16.msra.mxu0 %v932
    %1324 = vmatprep.subr.bf16.mxu0 0
    %1325 = vmatpush1.bf16.msra.mxu0 %v935
    %1326 = vmatprep.subr.bf16.mxu0 0
    %1327 = vmatpush1.bf16.msra.mxu0 %v938
    %1328 = vmatprep.subr.bf16.mxu0 0
    %1329 = vmatpush1.bf16.msra.mxu0 %v941
    %1330 = vmatprep.subr.bf16.mxu0 0
    %1331 = vmatpush1.bf16.msra.mxu0 %v944
    %1332 = vmatprep.subr.bf16.mxu0 0
    %1333 = vmatpush1.bf16.msra.mxu0 %v947
    %1334 = vmatprep.subr.bf16.mxu0 0
    %1335 = vmatpush1.bf16.msra.mxu0 %v950
    %1336 = vmatprep.subr.bf16.mxu0 0
    %1337 = vmatpush1.bf16.msra.mxu0 %v953
    %1338 = vmatprep.subr.bf16.mxu0 0
    %1339 = vmatpush1.bf16.msra.mxu0 %v956
    %1340 = vmatprep.subr.bf16.mxu0 0
    %1341 = vmatpush1.bf16.msra.mxu0 %v959
    %1342 = vmatprep.subr.bf16.mxu0 0
    %1343 = vmatpush1.bf16.msra.mxu0 %v962
    %1344 = vmatprep.subr.bf16.mxu0 0
    %1345 = vmatpush1.bf16.msra.mxu0 %v965
    %1346 = vmatprep.subr.bf16.mxu0 0
    %1347 = vmatpush1.bf16.msra.mxu0 %v968
    %1348 = vmatprep.mubr.bf16.mxu0 %v336
    %1349 = vmatmul.mubr.bf16.gmra.mrb[0].mxu0 %v322
    %v1350 = vpop.f32.mrb[0].mxu0
    %v1351 = vadd.f32 %v1311, %v1350
    %v1352 = vpop.f32.mrb[0].mxu0
    %v1353 = vpop.f32.mrb[0].mxu0
    %v1354 = vpop.f32.mrb[0].mxu0
    %1355 = vdwg.mxu0
    %v1356 = vxor.u32 %v1230, 2147483648
    %v1357 = vmul.f32 %v1356, 1.442695
    %v1358 = vpow.pop %v1357
    %v1359 = vadd.f32 %v1358, 1.0
    %v1360 = vrcp.pop %v1359
    %v1361 = vmul.f32 1.0, %v1360
    %v1362 = vtanh.pop %v1232
    %v1363 = vxor.u32 %v1351, 2147483648
    %v1364 = vmul.f32 %v1363, 1.442695
    %v1365 = vpow.pop %v1364
    %v1366 = vadd.f32 %v1365, 1.0
    %v1367 = vrcp.pop %v1366
    %v1368 = vmul.f32 1.0, %v1367
    %v1369 = vmul.f32 %v1361, %v1362
    %v1370 = vtanh.pop %v1369
    %v1371 = vmul.f32 %v1368, %v1370
    %v1372 = vpack.c.bf16 %v1371, %v1371
    %v1373 = vld [vmem:[#allocation7] sm:$0xff]
    %v1374 = vld [vmem:[#allocation7 + $0x8] sm:$0xf]
    %v1375 = vld [vmem:[#allocation7 + $0xc] sm:$0xff]
    %v1376 = vld [vmem:[#allocation7 + $0x14] sm:$0xf]
    %v1377 = vld [vmem:[#allocation7 + $0x18] sm:$0xff]
    %v1378 = vld [vmem:[#allocation7 + $0x20] sm:$0xf]
    %v1379 = vld [vmem:[#allocation7 + $0x24] sm:$0xff]
    %v1380 = vld [vmem:[#allocation7 + $0x2c] sm:$0xf]
    %v1381 = vld [vmem:[#allocation7 + $0x30] sm:$0xff]
    %v1382 = vld [vmem:[#allocation7 + $0x38] sm:$0xf]
    %v1383 = vld [vmem:[#allocation7 + $0x3c] sm:$0xff]
    %v1384 = vld [vmem:[#allocation7 + $0x44] sm:$0xf]
    %v1385 = vld [vmem:[#allocation7 + $0x48] sm:$0xff]
    %v1386 = vld [vmem:[#allocation7 + $0x50] sm:$0xf]
    %v1387 = vld [vmem:[#allocation7 + $0x54] sm:$0xff]
    %v1388 = vld [vmem:[#allocation7 + $0x5c] sm:$0xf]
    %v1389 = vld [vmem:[#allocation7 + $0x60] sm:$0xff]
    %v1390 = vld [vmem:[#allocation7 + $0x68] sm:$0xf]
    %v1391 = vld [vmem:[#allocation7 + $0x6c] sm:$0xff]
    %v1392 = vld [vmem:[#allocation7 + $0x74] sm:$0xf]
    %v1393 = vld [vmem:[#allocation7 + $0x78] sm:$0xff]
    %v1394 = vld [vmem:[#allocation7 + $0x80] sm:$0xf]
    %v1395 = vld [vmem:[#allocation7 + $0x84] sm:$0xff]
    %v1396 = vld [vmem:[#allocation7 + $0x8c] sm:$0xf]
    %v1397 = vld [vmem:[#allocation7 + $0x90] sm:$0xff]
    %v1398 = vld [vmem:[#allocation7 + $0x98] sm:$0xf]
    %v1399 = vld [vmem:[#allocation7 + $0x9c] sm:$0xff]
    %v1400 = vld [vmem:[#allocation7 + $0xa4] sm:$0xf]
    %v1401 = vld [vmem:[#allocation7 + $0xa8] sm:$0xff]
    %v1402 = vld [vmem:[#allocation7 + $0xb0] sm:$0xf]
    %v1403 = vld [vmem:[#allocation7 + $0xb4] sm:$0xff]
    %v1404 = vld [vmem:[#allocation7 + $0xbc] sm:$0xf]
    %v1405 = vld [vmem:[%s4] sm:$0x7]
    %v1407 = vlaneseq
    %v1408 = vshrl.u32 %v1407, 7
    %v1409 = vsub.s32 0, %v1408
    %v1410 = vrot.slane %v1405, %v1409
    %v1411 = vlaneseq
    %v1412 = vshrl.u32 %v1411, 7
    %v1413 = vsub.s32 1, %v1412
    %v1414 = vrot.slane %v1405, %v1413
    %v1415 = vlaneseq
    %v1416 = vshrl.u32 %v1415, 7
    %v1417 = vsub.s32 2, %v1416
    %v1418 = vrot.slane %v1405, %v1417
    %v1454 = vunpack.c.l.b16 %v1373
    %v1455 = vunpack.c.h.b16 %v1373
    %v1456 = vunpack.c.l.b16 %v1374
    %v1457 = vunpack.c.l.b16 %v1375
    %v1458 = vunpack.c.h.b16 %v1375
    %v1459 = vunpack.c.l.b16 %v1376
    %v1460 = vunpack.c.l.b16 %v1377
    %v1461 = vunpack.c.h.b16 %v1377
    %v1462 = vunpack.c.l.b16 %v1378
    %v1463 = vunpack.c.l.b16 %v1379
    %v1464 = vunpack.c.h.b16 %v1379
    %v1465 = vunpack.c.l.b16 %v1380
    %v1466 = vunpack.c.l.b16 %v1381
    %v1467 = vunpack.c.h.b16 %v1381
    %v1468 = vunpack.c.l.b16 %v1382
    %v1469 = vunpack.c.l.b16 %v1383
    %v1470 = vunpack.c.h.b16 %v1383
    %v1471 = vunpack.c.l.b16 %v1384
    %v1472 = vunpack.c.l.b16 %v1385
    %v1473 = vunpack.c.h.b16 %v1385
    %v1474 = vunpack.c.l.b16 %v1386
    %v1475 = vunpack.c.l.b16 %v1387
    %v1476 = vunpack.c.h.b16 %v1387
    %v1477 = vunpack.c.l.b16 %v1388
    %v1478 = vunpack.c.l.b16 %v1389
    %v1479 = vunpack.c.h.b16 %v1389
    %v1480 = vunpack.c.l.b16 %v1390
    %v1481 = vunpack.c.l.b16 %v1391
    %v1482 = vunpack.c.h.b16 %v1391
    %v1483 = vunpack.c.l.b16 %v1392
    %v1484 = vunpack.c.l.b16 %v1393
    %v1485 = vunpack.c.h.b16 %v1393
    %v1486 = vunpack.c.l.b16 %v1394
    %v1487 = vunpack.c.l.b16 %v1395
    %v1488 = vunpack.c.h.b16 %v1395
    %v1489 = vunpack.c.l.b16 %v1396
    %v1490 = vunpack.c.l.b16 %v1397
    %v1491 = vunpack.c.h.b16 %v1397
    %v1492 = vunpack.c.l.b16 %v1398
    %v1493 = vunpack.c.l.b16 %v1399
    %v1494 = vunpack.c.h.b16 %v1399
    %v1495 = vunpack.c.l.b16 %v1400
    %v1496 = vunpack.c.l.b16 %v1401
    %v1497 = vunpack.c.h.b16 %v1401
    %v1498 = vunpack.c.l.b16 %v1402
    %v1499 = vunpack.c.l.b16 %v1403
    %v1500 = vunpack.c.h.b16 %v1403
    %v1501 = vunpack.c.l.b16 %v1404
    %v1502 = vpack.c.b16 %v1457, %v1454
    %v1503 = vpack.c.b16 %v1458, %v1455
    %v1504 = vpack.c.b16 %v1459, %v1456
    %v1505 = vpack.c.b16 %v1463, %v1460
    %v1506 = vpack.c.b16 %v1464, %v1461
    %v1507 = vpack.c.b16 %v1465, %v1462
    %v1508 = vpack.c.b16 %v1469, %v1466
    %v1509 = vpack.c.b16 %v1470, %v1467
    %v1510 = vpack.c.b16 %v1471, %v1468
    %v1511 = vpack.c.b16 %v1475, %v1472
    %v1512 = vpack.c.b16 %v1476, %v1473
    %v1513 = vpack.c.b16 %v1477, %v1474
    %v1514 = vpack.c.b16 %v1481, %v1478
    %v1515 = vpack.c.b16 %v1482, %v1479
    %v1516 = vpack.c.b16 %v1483, %v1480
    %v1517 = vpack.c.b16 %v1487, %v1484
    %v1518 = vpack.c.b16 %v1488, %v1485
    %v1519 = vpack.c.b16 %v1489, %v1486
    %v1520 = vpack.c.b16 %v1493, %v1490
    %v1521 = vpack.c.b16 %v1494, %v1491
    %v1522 = vpack.c.b16 %v1495, %v1492
    %v1523 = vpack.c.b16 %v1499, %v1496
    %v1524 = vpack.c.b16 %v1500, %v1497
    %v1525 = vpack.c.b16 %v1501, %v1498
    %1550 = vmatprep.subr.bf16.mxu0 %v1503
    %1551 = vmatpush1.bf16.msra.mxu0 %v1502
    %1552 = vmatprep.subr.bf16.mxu0 %v1506
    %1553 = vmatpush1.bf16.msra.mxu0 %v1505
    %1554 = vmatprep.subr.bf16.mxu0 %v1509
    %1555 = vmatpush1.bf16.msra.mxu0 %v1508
    %1556 = vmatprep.subr.bf16.mxu0 %v1512
    %1557 = vmatpush1.bf16.msra.mxu0 %v1511
    %1558 = vmatprep.subr.bf16.mxu0 %v1515
    %1559 = vmatpush1.bf16.msra.mxu0 %v1514
    %1560 = vmatprep.subr.bf16.mxu0 %v1518
    %1561 = vmatpush1.bf16.msra.mxu0 %v1517
    %1562 = vmatprep.subr.bf16.mxu0 %v1521
    %1563 = vmatpush1.bf16.msra.mxu0 %v1520
    %1564 = vmatprep.subr.bf16.mxu0 %v1524
    %1565 = vmatpush1.bf16.msra.mxu0 %v1523
    %1566 = vmatprep.subr.bf16.mxu0 0
    %1567 = vmatpush1.bf16.msra.mxu0 0
    %1568 = vmatprep.subr.bf16.mxu0 0
    %1569 = vmatpush1.bf16.msra.mxu0 0
    %1570 = vmatprep.subr.bf16.mxu0 0
    %1571 = vmatpush1.bf16.msra.mxu0 0
    %1572 = vmatprep.subr.bf16.mxu0 0
    %1573 = vmatpush1.bf16.msra.mxu0 0
    %1574 = vmatprep.subr.bf16.mxu0 0
    %1575 = vmatpush1.bf16.msra.mxu0 0
    %1576 = vmatprep.subr.bf16.mxu0 0
    %1577 = vmatpush1.bf16.msra.mxu0 0
    %1578 = vmatprep.subr.bf16.mxu0 0
    %1579 = vmatpush1.bf16.msra.mxu0 0
    %1580 = vmatprep.subr.bf16.mxu0 0
    %1581 = vmatpush1.bf16.msra.mxu0 0
    %1582 = vmatprep.mubr.bf16.mxu0 0
    %1583 = vmatmul.mubr.bf16.gmra.mrb[0].mxu0 %v1372
    %v1584 = vpop.f32.mrb[0].mxu0
    %v1585 = vadd.f32 %v1410, %v1584
    %v1586 = vpop.f32.mrb[0].mxu0
    %v1587 = vadd.f32 %v1414, %v1586
    %v1588 = vpop.f32.mrb[0].mxu0
    %v1589 = vpop.f32.mrb[0].mxu0
    %1590 = vdwg.mxu0
    %1591 = vmatprep.subr.bf16.mxu0 0
    %1592 = vmatpush1.bf16.msra.mxu0 %v1504
    %1593 = vmatprep.subr.bf16.mxu0 0
    %1594 = vmatpush1.bf16.msra.mxu0 %v1507
    %1595 = vmatprep.subr.bf16.mxu0 0
    %1596 = vmatpush1.bf16.msra.mxu0 %v1510
    %1597 = vmatprep.subr.bf16.mxu0 0
    %1598 = vmatpush1.bf16.msra.mxu0 %v1513
    %1599 = vmatprep.subr.bf16.mxu0 0
    %1600 = vmatpush1.bf16.msra.mxu0 %v1516
    %1601 = vmatprep.subr.bf16.mxu0 0
    %1602 = vmatpush1.bf16.msra.mxu0 %v1519
    %1603 = vmatprep.subr.bf16.mxu0 0
    %1604 = vmatpush1.bf16.msra.mxu0 %v1522
    %1605 = vmatprep.subr.bf16.mxu0 0
    %1606 = vmatpush1.bf16.msra.mxu0 %v1525
    %1607 = vmatprep.subr.bf16.mxu0 0
    %1608 = vmatpush1.bf16.msra.mxu0 0
    %1609 = vmatprep.subr.bf16.mxu0 0
    %1610 = vmatpush1.bf16.msra.mxu0 0
    %1611 = vmatprep.subr.bf16.mxu0 0
    %1612 = vmatpush1.bf16.msra.mxu0 0
    %1613 = vmatprep.subr.bf16.mxu0 0
    %1614 = vmatpush1.bf16.msra.mxu0 0
    %1615 = vmatprep.subr.bf16.mxu0 0
    %1616 = vmatpush1.bf16.msra.mxu0 0
    %1617 = vmatprep.subr.bf16.mxu0 0
    %1618 = vmatpush1.bf16.msra.mxu0 0
    %1619 = vmatprep.subr.bf16.mxu0 0
    %1620 = vmatpush1.bf16.msra.mxu0 0
    %1621 = vmatprep.subr.bf16.mxu0 0
    %1622 = vmatpush1.bf16.msra.mxu0 0
    %1623 = vmatprep.mubr.bf16.mxu0 0
    %1624 = vmatmul.mubr.bf16.gmra.mrb[0].mxu0 %v1372
    %v1625 = vpop.f32.mrb[0].mxu0
    %v1626 = vadd.f32 %v1418, %v1625
    %v1627 = vpop.f32.mrb[0].mxu0
    %v1628 = vpop.f32.mrb[0].mxu0
    %v1629 = vpop.f32.mrb[0].mxu0
    %1630 = vdwg.mxu0
    %v1631 = vxor.u32 %v1585, 2147483648
    %v1632 = vmul.f32 %v1631, 1.442695
    %v1633 = vpow.pop %v1632
    %v1634 = vadd.f32 %v1633, 1.0
    %v1635 = vrcp.pop %v1634
    %v1636 = vmul.f32 1.0, %v1635
    %v1637 = vtanh.pop %v1587
    %v1638 = vxor.u32 %v1626, 2147483648
    %v1639 = vmul.f32 %v1638, 1.442695
    %v1640 = vpow.pop %v1639
    %v1641 = vadd.f32 %v1640, 1.0
    %v1642 = vrcp.pop %v1641
    %v1643 = vmul.f32 1.0, %v1642
    %v1644 = vmul.f32 %v1636, %v1637
    %v1645 = vtanh.pop %v1644
    %v1646 = vmul.f32 %v1643, %v1645
    %v1647 = vpack.c.bf16 %v1646, %v1646
    %v1648 = vld [vmem:[#allocation8] sm:$0xf]
    %v1649 = vld [vmem:[#allocation8 + $0x4] sm:$0xf]
    %v1650 = vld [vmem:[#allocation8 + $0x8] sm:$0xf]
    %v1651 = vld [vmem:[#allocation8 + $0xc] sm:$0xf]
    %v1652 = vld [vmem:[#allocation8 + $0x10] sm:$0xf]
    %v1653 = vld [vmem:[#allocation8 + $0x14] sm:$0xf]
    %v1654 = vld [vmem:[#allocation8 + $0x18] sm:$0xf]
    %v1655 = vld [vmem:[#allocation8 + $0x1c] sm:$0xf]
    %v1656 = vld [vmem:[#allocation8 + $0x20] sm:$0xf]
    %v1657 = vld [vmem:[#allocation8 + $0x24] sm:$0xf]
    %v1658 = vld [vmem:[#allocation8 + $0x28] sm:$0xf]
    %v1659 = vld [vmem:[#allocation8 + $0x2c] sm:$0xf]
    %v1660 = vld [vmem:[#allocation8 + $0x30] sm:$0xf]
    %v1661 = vld [vmem:[#allocation8 + $0x34] sm:$0xf]
    %v1662 = vld [vmem:[#allocation8 + $0x38] sm:$0xf]
    %v1663 = vld [vmem:[#allocation8 + $0x3c] sm:$0xf]
    %v1664 = vld [vmem:[%s6] sm:$0x1]
    %v1666 = vlaneseq
    %v1667 = vshrl.u32 %v1666, 7
    %v1668 = vsub.s32 0, %v1667
    %v1669 = vrot.slane %v1664, %v1668
    %v1687 = vunpack.c.l.b16 %v1648
    %v1688 = vunpack.c.l.b16 %v1649
    %v1689 = vunpack.c.l.b16 %v1650
    %v1690 = vunpack.c.l.b16 %v1651
    %v1691 = vunpack.c.l.b16 %v1652
    %v1692 = vunpack.c.l.b16 %v1653
    %v1693 = vunpack.c.l.b16 %v1654
    %v1694 = vunpack.c.l.b16 %v1655
    %v1695 = vunpack.c.l.b16 %v1656
    %v1696 = vunpack.c.l.b16 %v1657
    %v1697 = vunpack.c.l.b16 %v1658
    %v1698 = vunpack.c.l.b16 %v1659
    %v1699 = vunpack.c.l.b16 %v1660
    %v1700 = vunpack.c.l.b16 %v1661
    %v1701 = vunpack.c.l.b16 %v1662
    %v1702 = vunpack.c.l.b16 %v1663
    %v1703 = vpack.c.b16 %v1688, %v1687
    %v1704 = vpack.c.b16 %v1690, %v1689
    %v1705 = vpack.c.b16 %v1692, %v1691
    %v1706 = vpack.c.b16 %v1694, %v1693
    %v1707 = vpack.c.b16 %v1696, %v1695
    %v1708 = vpack.c.b16 %v1698, %v1697
    %v1709 = vpack.c.b16 %v1700, %v1699
    %v1710 = vpack.c.b16 %v1702, %v1701
    %1719 = vmatprep.subr.bf16.mxu0 0
    %1720 = vmatpush1.bf16.msra.mxu0 %v1703
    %1721 = vmatprep.subr.bf16.mxu0 0
    %1722 = vmatpush1.bf16.msra.mxu0 %v1704
    %1723 = vmatprep.subr.bf16.mxu0 0
    %1724 = vmatpush1.bf16.msra.mxu0 %v1705
    %1725 = vmatprep.subr.bf16.mxu0 0
    %1726 = vmatpush1.bf16.msra.mxu0 %v1706
    %1727 = vmatprep.subr.bf16.mxu0 0
    %1728 = vmatpush1.bf16.msra.mxu0 %v1707
    %1729 = vmatprep.subr.bf16.mxu0 0
    %1730 = vmatpush1.bf16.msra.mxu0 %v1708
    %1731 = vmatprep.subr.bf16.mxu0 0
    %1732 = vmatpush1.bf16.msra.mxu0 %v1709
    %1733 = vmatprep.subr.bf16.mxu0 0
    %1734 = vmatpush1.bf16.msra.mxu0 %v1710
    %1735 = vmatprep.subr.bf16.mxu0 0
    %1736 = vmatpush1.bf16.msra.mxu0 0
    %1737 = vmatprep.subr.bf16.mxu0 0
    %1738 = vmatpush1.bf16.msra.mxu0 0
    %1739 = vmatprep.subr.bf16.mxu0 0
    %1740 = vmatpush1.bf16.msra.mxu0 0
    %1741 = vmatprep.subr.bf16.mxu0 0
    %1742 = vmatpush1.bf16.msra.mxu0 0
    %1743 = vmatprep.subr.bf16.mxu0 0
    %1744 = vmatpush1.bf16.msra.mxu0 0
    %1745 = vmatprep.subr.bf16.mxu0 0
    %1746 = vmatpush1.bf16.msra.mxu0 0
    %1747 = vmatprep.subr.bf16.mxu0 0
    %1748 = vmatpush1.bf16.msra.mxu0 0
    %1749 = vmatprep.subr.bf16.mxu0 0
    %1750 = vmatpush1.bf16.msra.mxu0 0
    %1751 = vmatprep.mubr.bf16.mxu0 0
    %1752 = vmatmul.mubr.bf16.gmra.mrb[0].mxu0 %v1647
    %v1753 = vpop.f32.mrb[0].mxu0
    %v1754 = vadd.f32 %v1669, %v1753
    %v1755 = vpop.f32.mrb[0].mxu0
    %v1756 = vpop.f32.mrb[0].mxu0
    %v1757 = vpop.f32.mrb[0].mxu0
    %1758 = vdwg.mxu0
    %1759 = vst [vmem:[#allocation10] sm:$0x3] %v1754
    // Predicated region
    $region46: #{tpu_custom_call.1} parent=1 // pred_check
      _
    $region47: #{tpu_custom_call.1} parent=1 // pred_check_branch
      %1761 = sbr.rel (0) target = $region49
    $region48: #{tpu_custom_call.1} parent=1 // pred_region
      %s1763 = ssub.s32 32, 32
      %1764 = vsyncadd [#allocation4], %s1763
      %s1766 = sshll.u32 [#allocation10], 4
      %s1767 = int_to_ptr.vmem [resolvable:$true] %s1766
      %1769 = dma.vmem_to_hbm [thread:$0]  %s1767, 32, %s7, [#allocation4]
    $region49: #{tpu_custom_call.1} parent=1 // pred_fallthru
      _
    // Predicated region
    $region50: #{tpu_custom_call.1} parent=1 // pred_check
      _
    $region51: #{tpu_custom_call.1} parent=1 // pred_check_branch
      %1771 = sbr.rel (0) target = $region53
    $region52: #{tpu_custom_call.1} parent=1 // pred_region
      %1772 = dma.done [#allocation4], 32
    $region53: #{tpu_custom_call.1} parent=1 // pred_fallthru
      _
    %1773 = vsyncpa [#allocation3], 1
    %1774 = vsyncpa [#allocation6], 1
    %1775 = vsyncpa [#allocation9], 1
    %1776 = vsyncpa [#allocation4], 1

</llo_original>
